<compile_context>
chip_gen: v5e
topology: v5e:2x2
jax: 0.10.0
libtpu: 0.0.40
codegen_flags: <defaults>
</compile_context>

<pallas_src>
import functools

import jax
import jax.numpy as jnp
from jax import lax
from jax.experimental import pallas as pl
from jax.experimental.pallas import tpu as pltpu

_F32 = jnp.float32
_BF16 = jnp.bfloat16
# Contract the leading (N) axis of both operands: out[i, j] = sum_n a[n, i] * b[n, j].
_DIMS_NN = (((0,), (0,)), ((), ()))


# ----------------------------------------------------------------------------
# Pass A: accumulate fT over N tiles, softmax at the last tile.
#   theta/phi : 1x1 convs == (TN, C_in) @ (C_in, C) matmuls (bf16 -> f32 acc)
#   fT[j, i] += sum_n phi[n, j] * theta[n, i]   (== f[i, j] of torch.bmm(theta, phi))
#   torch softmax(dim=1) is over i == the lane axis of fT.
# ----------------------------------------------------------------------------
def _nlce_attn_ft_kernel(x_ref, wth_ref, bth_ref, wph_ref, bph_ref,
                         ft_ref, acc_ref):
    j = pl.program_id(1)

    @pl.when(j == 0)
    def _():
        acc_ref[...] = jnp.zeros_like(acc_ref)

    xq = x_ref[0]                                              # (TN, C_in) bf16
    theta = (jnp.dot(xq, wth_ref[...], preferred_element_type=_F32)
             + bth_ref[...]).astype(_BF16)                     # (TN, C)
    phi = (jnp.dot(xq, wph_ref[...], preferred_element_type=_F32)
           + bph_ref[...]).astype(_BF16)                       # (TN, C)
    acc_ref[...] += lax.dot_general(phi, theta, _DIMS_NN,
                                    preferred_element_type=_F32)

    @pl.when(j == pl.num_programs(1) - 1)
    def _():
        ft = acc_ref[...]
        ft = jnp.exp(ft - jnp.max(ft, axis=1, keepdims=True))
        ft = ft * pl.reciprocal(jnp.sum(ft, axis=1, keepdims=True), approx=True)
        ft_ref[0] = ft.astype(ft_ref.dtype)


# ----------------------------------------------------------------------------
# Pass B (per N-tile): g -> y -> z -> z3 -> fused EncNet Encoding.
#   y  = g @ fT
#   z  = y @ W2 + b2 + x            -> output 1 (bf16)
#   z3 = z @ W3 + b3                (never leaves VMEM)
#   sl[n,k] = s[k] * (||z3_n||^2 - 2 z3_n.c_k + ||c_k||^2)
#   a = softmax_k(sl)               (softmax over the lane axis)
#   ekd[k,d] += sum_n a[n,k]*z3[n,d]          -> output 2 (K, D): D lane-dense
#   asum[k]  += sum_n a[n,k]                  -> output 3 (tiny)
# (The "- c_k * asum_k" correction is O(B*K*D) and done in the XLA glue.)
# ----------------------------------------------------------------------------
def _nlce_apply_encode_kernel(x_ref, ft_ref, wg_ref, bg_ref, w2_ref, b2_ref,
                              w3_ref, b3_ref, cwt_ref, c2_ref, sc_ref,
                              z_ref, e_ref, asum_ref,
                              ekd_acc, asum_acc):
    j = pl.program_id(1)

    @pl.when(j == 0)
    def _():
        ekd_acc[...] = jnp.zeros_like(ekd_acc)
        asum_acc[...] = jnp.zeros_like(asum_acc)

    xq = x_ref[0]                                              # (TN, C_in) bf16
    g = (jnp.dot(xq, wg_ref[...], preferred_element_type=_F32)
         + bg_ref[...]).astype(_BF16)                          # (TN, C)
    y = jnp.dot(g, ft_ref[0], preferred_element_type=_F32).astype(_BF16)
    z = (jnp.dot(y, w2_ref[...], preferred_element_type=_F32)
         + b2_ref[...] + xq.astype(_F32))                      # (TN, C_in) f32
    z_ref[0] = z.astype(z_ref.dtype)                           # bf16 writeback

    z3 = (jnp.dot(z.astype(_BF16), w3_ref[...], preferred_element_type=_F32)
          + b3_ref[...])                                       # (TN, D) f32
    z3q = z3.astype(_BF16)

    xx = jnp.sum(z3 * z3, axis=1, keepdims=True)               # (TN, 1)
    xc = jnp.dot(z3q, cwt_ref[...], preferred_element_type=_F32)   # (TN, K)
    sl = sc_ref[...] * (xx - 2.0 * xc + c2_ref[...])
    a = jnp.exp(sl - jnp.max(sl, axis=1, keepdims=True))
    a = a * pl.reciprocal(jnp.sum(a, axis=1, keepdims=True), approx=True)

    asum_acc[...] += jnp.sum(a, axis=0, keepdims=True)         # (1, K)
    ekd_acc[...] += lax.dot_general(a.astype(_BF16), z3q, _DIMS_NN,
                                    preferred_element_type=_F32)   # (K, D)

    @pl.when(j == pl.num_programs(1) - 1)
    def _():
        e_ref[0] = ekd_acc[...]
        asum_ref[0] = asum_acc[...]


def _pick_tn(n):
    # Prefer MXU-friendly tile heights (>=256 fills the v6e/v7x 256-wide MXU,
    # 128 the v5e MXU); fall back to any divisor that keeps the sublane rule,
    # or the full extent (always a legal block shape).
    for tn in (1024, 512, 256, 128, 64, 32, 16, 8):
        if n % tn == 0:
            return tn
    return n


def _vmem_limit_bytes(requested):
    cap = 64 << 20                       # conservative default: v7x per-core VMEM
    try:
        info = pltpu.get_tpu_info()
        cap = int(getattr(info, "vmem_capacity_bytes", cap) or cap)
    except Exception:
        pass
    ceiling = max(int(cap * 0.85), 16 << 20)       # ~54 MiB v7x, ~108 MiB v5e/v6e
    floor = min(32 << 20, ceiling)
    return int(max(min(requested, ceiling), floor))


def nlce_forward(x, params, *, tn=None):
    B, C_in, H, W = x.shape
    C = C_in // 2
    D = C
    K = D // 4
    N = H * W
    if tn is None or N % tn != 0:
        tn = _pick_tn(N)
    nt = N // tn

    # NCHW -> channels-last (B, N, C_in); bf16 MXU operands (f32 accumulation).
    x_flat = x.reshape(B, C_in, N).transpose(0, 2, 1).astype(_BF16)

    wth = params['w_theta'].astype(_BF16)
    wph = params['w_phi'].astype(_BF16)
    wg = params['w_g'].astype(_BF16)
    w2 = params['w2'].astype(_BF16)
    w3 = params['w3'].astype(_BF16)
    bth, bph, bg = params['b_theta'], params['b_phi'], params['b_g']
    b2, b3 = params['b2'], params['b3']

    # Batch-invariant Encoding constants, hoisted out of the kernel.
    cw_q = params['codewords'].astype(_BF16)            # (K, D) bf16-quantized
    cw_f32 = cw_q.astype(_F32)
    cwt = cw_q.T                                         # (D, K) stationary MXU operand
    c2 = jnp.sum(cw_f32 * cw_f32, axis=1)[None, :]       # (1, K) ||c_k||^2
    sc = params['scale']                                 # (1, K)

    # Generous VMEM request (double-buffered x/z tiles + weights + f32
    # intermediates + headroom), clamped to ~85% of the chip's capacity.
    bytes_blk = 2 * 2 * (tn * C_in * 2)                                      # x + z tiles
    bytes_wts = 2 * ((3 * C_in * C + C * C_in + C_in * D + D * K) * 2
                     + (3 * C + C_in + D + 2 * K) * 4 + C * C * 2)
    bytes_inter = tn * (6 * C + 4 * C_in + 3 * D + 6 * K + 8) * 4
    bytes_small = 4 * (C * C + K * D + K) * 4
    vmem_limit = _vmem_limit_bytes(bytes_blk + bytes_wts + bytes_inter
                                   + bytes_small + (8 << 20))

    # ---- pass A: attention statistics fT (B, C, C) ----
    ft = pl.pallas_call(
        _nlce_attn_ft_kernel,
        out_shape=jax.ShapeDtypeStruct((B, C, C), _BF16),
        grid_spec=pltpu.PrefetchScalarGridSpec(
            num_scalar_prefetch=0,
            grid=(B, nt),
            in_specs=[
                pl.BlockSpec((1, tn, C_in), lambda b, j: (b, j, 0)),   # x tile
                pl.BlockSpec((C_in, C), lambda b, j: (0, 0)),          # w_theta
                pl.BlockSpec((1, C), lambda b, j: (0, 0)),             # b_theta
                pl.BlockSpec((C_in, C), lambda b, j: (0, 0)),          # w_phi
                pl.BlockSpec((1, C), lambda b, j: (0, 0)),             # b_phi
            ],
            out_specs=pl.BlockSpec((1, C, C), lambda b, j: (b, 0, 0)), # fT resident over j
            scratch_shapes=[pltpu.VMEM((C, C), _F32)],
        ),
        compiler_params=pltpu.CompilerParams(
            dimension_semantics=("parallel", "arbitrary"),
            vmem_limit_bytes=vmem_limit),
    )(x_flat, wth, bth, wph, bph)

    # ---- pass B: apply attention + conv2/conv3 + fused Encoding ----
    z_flat, e_raw, asum = pl.pallas_call(
        _nlce_apply_encode_kernel,
        out_shape=(jax.ShapeDtypeStruct((B, N, C_in), _BF16),
                   jax.ShapeDtypeStruct((B, K, D), _F32),
                   jax.ShapeDtypeStruct((B, 1, K), _F32)),
        grid_spec=pltpu.PrefetchScalarGridSpec(
            num_scalar_prefetch=0,
            grid=(B, nt),
            in_specs=[
                pl.BlockSpec((1, tn, C_in), lambda b, j: (b, j, 0)),   # x tile
                pl.BlockSpec((1, C, C), lambda b, j: (b, 0, 0)),       # fT (per batch)
                pl.BlockSpec((C_in, C), lambda b, j: (0, 0)),          # w_g
                pl.BlockSpec((1, C), lambda b, j: (0, 0)),             # b_g
                pl.BlockSpec((C, C_in), lambda b, j: (0, 0)),          # w2
                pl.BlockSpec((1, C_in), lambda b, j: (0, 0)),          # b2
                pl.BlockSpec((C_in, D), lambda b, j: (0, 0)),          # w3
                pl.BlockSpec((1, D), lambda b, j: (0, 0)),             # b3
                pl.BlockSpec((D, K), lambda b, j: (0, 0)),             # codewords^T (bf16)
                pl.BlockSpec((1, K), lambda b, j: (0, 0)),             # ||c_k||^2
                pl.BlockSpec((1, K), lambda b, j: (0, 0)),             # scale
            ],
            out_specs=(pl.BlockSpec((1, tn, C_in), lambda b, j: (b, j, 0)),  # z (bf16)
                       pl.BlockSpec((1, K, D), lambda b, j: (b, 0, 0)),      # aggregate
                       pl.BlockSpec((1, 1, K), lambda b, j: (b, 0, 0))),     # softmax mass
            scratch_shapes=[pltpu.VMEM((K, D), _F32),
                            pltpu.VMEM((1, K), _F32)],
        ),
        compiler_params=pltpu.CompilerParams(
            dimension_semantics=("parallel", "arbitrary"),
            vmem_limit_bytes=vmem_limit),
    )(x_flat, ft, wg, bg, w2, b2, w3, b3, cwt, c2, sc)

    # ---- tiny glue (O(B*K*D) + O(B*C_in), cross-batch stats): XLA fuses it ----
    e = e_raw - asum[:, 0, :, None] * cw_f32[None, :, :]   # complete Encoding (B, K, D)
    e = e.reshape(B, D, K)                # PyTorch `e.reshape(B, D, -1)` raw reinterpretation
    # BatchNorm1d, training-mode batch statistics (module default mode).
    mean = jnp.mean(e, axis=(0, 2), keepdims=True)
    var = jnp.mean((e - mean) ** 2, axis=(0, 2), keepdims=True)
    e = (e - mean) / jnp.sqrt(var + 1e-5)
    e = e * params['bn_weight'][None, :, None] + params['bn_bias'][None, :, None]
    e = jnp.maximum(e, 0.0)
    e_sum = jnp.sum(e, axis=2)                                       # (B, D)
    gamma = jax.nn.sigmoid(jnp.dot(e_sum, params['fc_weight'].T) + params['fc_bias'])

    # PyTorch: gamma.repeat(1, H*W).view(B, C_in, H, W) then z * gamma  (kept verbatim).
    gamma_map = jnp.tile(gamma, (1, H * W)).reshape(B, C_in, H, W)
    z_nchw = z_flat.astype(_F32).transpose(0, 2, 1).reshape(B, C_in, H, W)
    return z_nchw * gamma_map


# ----------------------------------------------------------------------------
# Pure-JAX reference (mirrors the PyTorch forward with the same bf16 operand
# quantization and bf16 z/fT storage as the kernels; the only intended
# divergences are the EUP approximate reciprocals and tile-split summation).
# ----------------------------------------------------------------------------
def nlce_reference(x, params):
    B, C_in, H, W = x.shape
    C = C_in // 2
    D = C
    K = D // 4
    N = H * W

    xl = x.reshape(B, C_in, N).transpose(0, 2, 1).astype(_BF16)      # (B, N, C_in)

    def mm(a, w):
        return jnp.einsum('bnc,cd->bnd', a.astype(_BF16), w.astype(_BF16),
                          preferred_element_type=_F32)

    theta = (mm(xl, params['w_theta']) + params['b_theta']).astype(_BF16)
    phi = (mm(xl, params['w_phi']) + params['b_phi']).astype(_BF16)
    g = (mm(xl, params['w_g']) + params['b_g']).astype(_BF16)
    fT = jnp.einsum('bnj,bni->bji', phi, theta, preferred_element_type=_F32)
    fT = jnp.exp(fT - jnp.max(fT, axis=2, keepdims=True))
    fT = (fT / jnp.sum(fT, axis=2, keepdims=True)).astype(_BF16)
    y = jnp.einsum('bnj,bji->bni', g, fT, preferred_element_type=_F32).astype(_BF16)
    z = mm(y, params['w2']) + params['b2'] + xl.astype(_F32)         # (B, N, C_in)
    z3 = mm(z, params['w3']) + params['b3']                          # (B, N, D)

    cw_q = params['codewords'].astype(_BF16).astype(_F32)
    xx = jnp.sum(z3 * z3, axis=2, keepdims=True)
    xc = jnp.einsum('bnd,kd->bnk', z3.astype(_BF16), cw_q.astype(_BF16),
                    preferred_element_type=_F32)
    c2 = jnp.sum(cw_q * cw_q, axis=1)[None, None, :]
    sl = params['scale'].reshape(1, 1, K) * (xx - 2.0 * xc + c2)
    a = jnp.exp(sl - jnp.max(sl, axis=2, keepdims=True))
    a = a / jnp.sum(a, axis=2, keepdims=True)
    asum = jnp.sum(a, axis=1)                                        # (B, K)
    e = jnp.einsum('bnk,bnd->bkd', a.astype(_BF16), z3.astype(_BF16),
                   preferred_element_type=_F32) - asum[:, :, None] * cw_q[None]

    e = e.reshape(B, D, K)
    mean = jnp.mean(e, axis=(0, 2), keepdims=True)
    var = jnp.mean((e - mean) ** 2, axis=(0, 2), keepdims=True)
    e = (e - mean) / jnp.sqrt(var + 1e-5)
    e = e * params['bn_weight'][None, :, None] + params['bn_bias'][None, :, None]
    e = jnp.maximum(e, 0.0)
    es = jnp.sum(e, axis=2)
    gamma = jax.nn.sigmoid(es @ params['fc_weight'].T + params['fc_bias'])
    gmap = jnp.tile(gamma, (1, H * W)).reshape(B, C_in, H, W)
    z_q = z.astype(_BF16).astype(_F32)            # the kernel writes z back in bf16
    return z_q.transpose(0, 2, 1).reshape(B, C_in, H, W) * gmap


def init_params(key, C_in):
    C = C_in // 2
    D = C
    K = D // 4
    ks = jax.random.split(key, 16)

    def w(k, shape, scale=0.1):
        return (scale * jax.random.normal(k, shape)).astype(_F32)

    return dict(
        w_theta=w(ks[0], (C_in, C)), b_theta=w(ks[1], (1, C)),
        w_phi=w(ks[2], (C_in, C)),   b_phi=w(ks[3], (1, C)),
        w_g=w(ks[4], (C_in, C)),     b_g=w(ks[5], (1, C)),
        w2=w(ks[6], (C, C_in)),      b2=w(ks[7], (1, C_in)),
        w3=w(ks[8], (C_in, D)),      b3=w(ks[9], (1, D)),
        codewords=w(ks[10], (K, D), 0.5),
        scale=w(ks[11], (1, K), 1.0),
        bn_weight=(1.0 + 0.1 * jax.random.normal(ks[12], (D,))).astype(_F32),
        bn_bias=w(ks[13], (D,)),
        fc_weight=w(ks[14], (C_in, D)),
        fc_bias=w(ks[15], (C_in,)),
    )


if __name__ == "__main__":
    key = jax.random.PRNGKey(0)
    B, C_in, H, W = 2, 16, 8, 8        # -> C = D = 8, K = 2, N = 64
    kx, kp = jax.random.split(key)
    x = jax.random.normal(kx, (B, C_in, H, W), jnp.float32)
    params = init_params(kp, C_in)

    # tn=32 -> 2 N-tiles per batch so the fT / encoding accumulation path is exercised.
    fwd = jax.jit(functools.partial(nlce_forward, tn=32))
    out = jax.block_until_ready(fwd(x, params))
    assert out.shape == (B, C_in, H, W)

    ref = nlce_reference(x, params)
    err = float(jnp.max(jnp.abs(out - ref)))
    # bf16 MXU operands + bf16 z/fT storage + EUP approximate reciprocals.
    assert err < 1e-2, f"mismatch vs reference: {err}"
    print("KERNEL_OK")
</pallas_src>

<mosaic_0001>
module attributes {stable_mosaic.version = 11 : i64} {
  func.func @_nlce_apply_encode_kernel(%arg0: i32, %arg1: i32, %arg2: memref<1x32x16xbf16, #tpu.memory_space<vmem>>, %arg3: memref<1x8x8xbf16, #tpu.memory_space<vmem>>, %arg4: memref<16x8xbf16, #tpu.memory_space<vmem>>, %arg5: memref<1x8xf32, #tpu.memory_space<vmem>>, %arg6: memref<8x16xbf16, #tpu.memory_space<vmem>>, %arg7: memref<1x16xf32, #tpu.memory_space<vmem>>, %arg8: memref<16x8xbf16, #tpu.memory_space<vmem>>, %arg9: memref<1x8xf32, #tpu.memory_space<vmem>>, %arg10: memref<8x2xbf16, #tpu.memory_space<vmem>>, %arg11: memref<1x2xf32, #tpu.memory_space<vmem>>, %arg12: memref<1x2xf32, #tpu.memory_space<vmem>>, %arg13: memref<1x32x16xbf16, #tpu.memory_space<vmem>>, %arg14: memref<1x2x8xf32, #tpu.memory_space<vmem>>, %arg15: memref<1x1x2xf32, #tpu.memory_space<vmem>>, %arg16: memref<2x8xf32, #tpu.memory_space<vmem>>, %arg17: memref<1x2xf32, #tpu.memory_space<vmem>>) attributes {dimension_semantics = [#tpu.dimension_semantics<parallel>, #tpu.dimension_semantics<arbitrary>], iteration_bounds = array<i64: 2, 2>, scalar_prefetch = 0 : i64, scratch_operands = 2 : i64, tpu.core_type = #tpu.core_type<tc>, window_params = [{transform_indices = @transform_0, window_bounds = array<i64: 1, 32, 16>}, {transform_indices = @transform_1, window_bounds = array<i64: 1, 8, 8>}, {pipeline_mode = #tpu.pipeline_mode<synchronous>, transform_indices = @transform_2, window_bounds = array<i64: 16, 8>}, {pipeline_mode = #tpu.pipeline_mode<synchronous>, transform_indices = @transform_3, window_bounds = array<i64: 1, 8>}, {pipeline_mode = #tpu.pipeline_mode<synchronous>, transform_indices = @transform_4, window_bounds = array<i64: 8, 16>}, {pipeline_mode = #tpu.pipeline_mode<synchronous>, transform_indices = @transform_5, window_bounds = array<i64: 1, 16>}, {pipeline_mode = #tpu.pipeline_mode<synchronous>, transform_indices = @transform_6, window_bounds = array<i64: 16, 8>}, {pipeline_mode = #tpu.pipeline_mode<synchronous>, transform_indices = @transform_7, window_bounds = array<i64: 1, 8>}, {pipeline_mode = #tpu.pipeline_mode<synchronous>, transform_indices = @transform_8, window_bounds = array<i64: 8, 2>}, {pipeline_mode = #tpu.pipeline_mode<synchronous>, transform_indices = @transform_9, window_bounds = array<i64: 1, 2>}, {pipeline_mode = #tpu.pipeline_mode<synchronous>, transform_indices = @transform_10, window_bounds = array<i64: 1, 2>}, {transform_indices = @transform_11, window_bounds = array<i64: 1, 32, 16>}, {transform_indices = @transform_12, window_bounds = array<i64: 1, 2, 8>}, {transform_indices = @transform_13, window_bounds = array<i64: 1, 1, 2>}]} {
    %c0_i32 = arith.constant 0 : i32
    %0 = arith.cmpi eq, %arg1, %c0_i32 : i32
    %1 = arith.extui %0 : i1 to i32
    %c0_i32_0 = arith.constant 0 : i32
    %2 = arith.cmpi ne, %1, %c0_i32_0 : i32
    scf.if %2 {
      %cst_46 = arith.constant 0.000000e+00 : f32
      %71 = vector.broadcast %cst_46 : f32 to vector<2x8xf32>
      %c0_47 = arith.constant 0 : index
      %c0_48 = arith.constant 0 : index
      %72 = vector.load %arg16[%c0_47, %c0_48] : memref<2x8xf32, #tpu.memory_space<vmem>>, vector<2x8xf32>
      tpu.vector_store %arg16[%c0_47, %c0_48], %71 {strides = array<i32>} : memref<2x8xf32, #tpu.memory_space<vmem>>, vector<2x8xf32>,
      %cst_49 = arith.constant 0.000000e+00 : f32
      %73 = vector.broadcast %cst_49 : f32 to vector<1x2xf32>
      %c0_50 = arith.constant 0 : index
      %c0_51 = arith.constant 0 : index
      %74 = vector.load %arg17[%c0_50, %c0_51] : memref<1x2xf32, #tpu.memory_space<vmem>>, vector<1x2xf32>
      tpu.vector_store %arg17[%c0_50, %c0_51], %73 {strides = array<i32>} : memref<1x2xf32, #tpu.memory_space<vmem>>, vector<1x2xf32>,
    } else {
    }
    %c0 = arith.constant 0 : index
    %c0_1 = arith.constant 0 : index
    %c0_2 = arith.constant 0 : index
    %3 = vector.load %arg2[%c0, %c0_1, %c0_2] : memref<1x32x16xbf16, #tpu.memory_space<vmem>>, vector<1x32x16xbf16>
    %4 = vector.shape_cast %3 : vector<1x32x16xbf16> to vector<32x16xbf16>
    %c0_3 = arith.constant 0 : index
    %c0_4 = arith.constant 0 : index
    %5 = vector.load %arg4[%c0_3, %c0_4] : memref<16x8xbf16, #tpu.memory_space<vmem>>, vector<16x8xbf16>
    %cst = arith.constant dense<0.000000e+00> : vector<32x8xf32>
    %6 = tpu.matmul %4, %5, %cst {dimension_numbers = #tpu.dot_dimension_numbers<[1], [0], [0], [1], [0, 0, 1, 1], [], []>} : vector<32x16xbf16>, vector<16x8xbf16>, vector<32x8xf32> -> vector<32x8xf32>
    %c0_5 = arith.constant 0 : index
    %c0_6 = arith.constant 0 : index
    %7 = vector.load %arg5[%c0_5, %c0_6] : memref<1x8xf32, #tpu.memory_space<vmem>>, vector<1x8xf32>
    %8 = vector.broadcast %7 : vector<1x8xf32> to vector<32x8xf32>
    %9 = arith.addf %6, %8 : vector<32x8xf32>
    %10 = arith.truncf %9 : vector<32x8xf32> to vector<32x8xbf16>
    %c0_7 = arith.constant 0 : index
    %c0_8 = arith.constant 0 : index
    %c0_9 = arith.constant 0 : index
    %11 = vector.load %arg3[%c0_7, %c0_8, %c0_9] : memref<1x8x8xbf16, #tpu.memory_space<vmem>>, vector<1x8x8xbf16>
    %12 = vector.shape_cast %11 : vector<1x8x8xbf16> to vector<8x8xbf16>
    %cst_10 = arith.constant dense<0.000000e+00> : vector<32x8xf32>
    %13 = tpu.matmul %10, %12, %cst_10 {dimension_numbers = #tpu.dot_dimension_numbers<[1], [0], [0], [1], [0, 0, 1, 1], [], []>} : vector<32x8xbf16>, vector<8x8xbf16>, vector<32x8xf32> -> vector<32x8xf32>
    %14 = arith.truncf %13 : vector<32x8xf32> to vector<32x8xbf16>
    %c0_11 = arith.constant 0 : index
    %c0_12 = arith.constant 0 : index
    %15 = vector.load %arg6[%c0_11, %c0_12] : memref<8x16xbf16, #tpu.memory_space<vmem>>, vector<8x16xbf16>
    %cst_13 = arith.constant dense<0.000000e+00> : vector<32x16xf32>
    %16 = tpu.matmul %14, %15, %cst_13 {dimension_numbers = #tpu.dot_dimension_numbers<[1], [0], [0], [1], [0, 0, 1, 1], [], []>} : vector<32x8xbf16>, vector<8x16xbf16>, vector<32x16xf32> -> vector<32x16xf32>
    %c0_14 = arith.constant 0 : index
    %c0_15 = arith.constant 0 : index
    %17 = vector.load %arg7[%c0_14, %c0_15] : memref<1x16xf32, #tpu.memory_space<vmem>>, vector<1x16xf32>
    %18 = vector.broadcast %17 : vector<1x16xf32> to vector<32x16xf32>
    %19 = arith.addf %16, %18 : vector<32x16xf32>
    %20 = arith.extf %4 : vector<32x16xbf16> to vector<32x16xf32>
    %21 = arith.addf %19, %20 : vector<32x16xf32>
    %22 = arith.truncf %21 : vector<32x16xf32> to vector<32x16xbf16>
    %c0_16 = arith.constant 0 : index
    %c0_17 = arith.constant 0 : index
    %c0_18 = arith.constant 0 : index
    %23 = vector.load %arg13[%c0_16, %c0_17, %c0_18] : memref<1x32x16xbf16, #tpu.memory_space<vmem>>, vector<1x32x16xbf16>
    %24 = vector.shape_cast %23 : vector<1x32x16xbf16> to vector<32x16xbf16>
    %25 = vector.shape_cast %22 : vector<32x16xbf16> to vector<1x32x16xbf16>
    tpu.vector_store %arg13[%c0_16, %c0_17, %c0_18], %25 {strides = array<i32>} : memref<1x32x16xbf16, #tpu.memory_space<vmem>>, vector<1x32x16xbf16>,
    %26 = arith.truncf %21 : vector<32x16xf32> to vector<32x16xbf16>
    %c0_19 = arith.constant 0 : index
    %c0_20 = arith.constant 0 : index
    %27 = vector.load %arg8[%c0_19, %c0_20] : memref<16x8xbf16, #tpu.memory_space<vmem>>, vector<16x8xbf16>
    %cst_21 = arith.constant dense<0.000000e+00> : vector<32x8xf32>
    %28 = tpu.matmul %26, %27, %cst_21 {dimension_numbers = #tpu.dot_dimension_numbers<[1], [0], [0], [1], [0, 0, 1, 1], [], []>} : vector<32x16xbf16>, vector<16x8xbf16>, vector<32x8xf32> -> vector<32x8xf32>
    %c0_22 = arith.constant 0 : index
    %c0_23 = arith.constant 0 : index
    %29 = vector.load %arg9[%c0_22, %c0_23] : memref<1x8xf32, #tpu.memory_space<vmem>>, vector<1x8xf32>
    %30 = vector.broadcast %29 : vector<1x8xf32> to vector<32x8xf32>
    %31 = arith.addf %28, %30 : vector<32x8xf32>
    %32 = arith.truncf %31 : vector<32x8xf32> to vector<32x8xbf16>
    %33 = arith.mulf %31, %31 : vector<32x8xf32>
    %cst_24 = arith.constant dense<0.000000e+00> : vector<32xf32>
    %34 = vector.multi_reduction <add>, %33, %cst_24 [1] : vector<32x8xf32> to vector<32xf32>
    %35 = vector.shape_cast %34 : vector<32xf32> to vector<32x1xf32>
    %c0_25 = arith.constant 0 : index
    %c0_26 = arith.constant 0 : index
    %36 = vector.load %arg10[%c0_25, %c0_26] : memref<8x2xbf16, #tpu.memory_space<vmem>>, vector<8x2xbf16>
    %cst_27 = arith.constant dense<0.000000e+00> : vector<32x2xf32>
    %37 = tpu.matmul %32, %36, %cst_27 {dimension_numbers = #tpu.dot_dimension_numbers<[1], [0], [0], [1], [0, 0, 1, 1], [], []>} : vector<32x8xbf16>, vector<8x2xbf16>, vector<32x2xf32> -> vector<32x2xf32>
    %c0_28 = arith.constant 0 : index
    %c0_29 = arith.constant 0 : index
    %38 = vector.load %arg12[%c0_28, %c0_29] : memref<1x2xf32, #tpu.memory_space<vmem>>, vector<1x2xf32>
    %cst_30 = arith.constant 2.000000e+00 : f32
    %39 = vector.broadcast %cst_30 : f32 to vector<32x2xf32>
    %40 = arith.mulf %39, %37 : vector<32x2xf32>
    %41 = vector.broadcast %35 : vector<32x1xf32> to vector<32x2xf32>
    %42 = arith.subf %41, %40 : vector<32x2xf32>
    %c0_31 = arith.constant 0 : index
    %c0_32 = arith.constant 0 : index
    %43 = vector.load %arg11[%c0_31, %c0_32] : memref<1x2xf32, #tpu.memory_space<vmem>>, vector<1x2xf32>
    %44 = vector.broadcast %43 : vector<1x2xf32> to vector<32x2xf32>
    %45 = arith.addf %42, %44 : vector<32x2xf32>
    %46 = vector.broadcast %38 : vector<1x2xf32> to vector<32x2xf32>
    %47 = arith.mulf %46, %45 : vector<32x2xf32>
    %cst_33 = arith.constant dense<0xFF800000> : vector<32xf32>
    %48 = vector.multi_reduction <maximumf>, %47, %cst_33 [1] : vector<32x2xf32> to vector<32xf32>
    %49 = vector.shape_cast %48 : vector<32xf32> to vector<32x1xf32>
    %50 = vector.broadcast %49 : vector<32x1xf32> to vector<32x2xf32>
    %51 = arith.subf %47, %50 : vector<32x2xf32>
    %52 = math.exp %51 : vector<32x2xf32>
    %cst_34 = arith.constant dense<0.000000e+00> : vector<32xf32>
    %53 = vector.multi_reduction <add>, %52, %cst_34 [1] : vector<32x2xf32> to vector<32xf32>
    %54 = vector.shape_cast %53 : vector<32xf32> to vector<32x1xf32>
    %55 = tpu.reciprocal %54 {approx = true} : vector<32x1xf32> -> vector<32x1xf32>
    %56 = vector.broadcast %55 : vector<32x1xf32> to vector<32x2xf32>
    %57 = arith.mulf %52, %56 : vector<32x2xf32>
    %c0_35 = arith.constant 0 : index
    %c0_36 = arith.constant 0 : index
    %58 = vector.load %arg17[%c0_35, %c0_36] : memref<1x2xf32, #tpu.memory_space<vmem>>, vector<1x2xf32>
    %cst_37 = arith.constant dense<0.000000e+00> : vector<2xf32>
    %59 = vector.multi_reduction <add>, %57, %cst_37 [0] : vector<32x2xf32> to vector<2xf32>
    %60 = vector.shape_cast %59 : vector<2xf32> to vector<1x2xf32>
    %61 = arith.addf %58, %60 : vector<1x2xf32>
    %c0_38 = arith.constant 0 : index
    %c0_39 = arith.constant 0 : index
    %62 = vector.load %arg17[%c0_38, %c0_39] : memref<1x2xf32, #tpu.memory_space<vmem>>, vector<1x2xf32>
    tpu.vector_store %arg17[%c0_38, %c0_39], %61 {strides = array<i32>} : memref<1x2xf32, #tpu.memory_space<vmem>>, vector<1x2xf32>,
    %c0_40 = arith.constant 0 : index
    %c0_41 = arith.constant 0 : index
    %63 = vector.load %arg16[%c0_40, %c0_41] : memref<2x8xf32, #tpu.memory_space<vmem>>, vector<2x8xf32>
    %64 = arith.truncf %57 : vector<32x2xf32> to vector<32x2xbf16>
    %cst_42 = arith.constant dense<0.000000e+00> : vector<2x8xf32>
    %65 = tpu.matmul %64, %32, %cst_42 {dimension_numbers = #tpu.dot_dimension_numbers<[0], [0], [1], [1], [0, 1, 1, 1], [], []>} : vector<32x2xbf16>, vector<32x8xbf16>, vector<2x8xf32> -> vector<2x8xf32>
    %66 = arith.addf %63, %65 : vector<2x8xf32>
    %c0_43 = arith.constant 0 : index
    %c0_44 = arith.constant 0 : index
    %67 = vector.load %arg16[%c0_43, %c0_44] : memref<2x8xf32, #tpu.memory_space<vmem>>, vector<2x8xf32>
    tpu.vector_store %arg16[%c0_43, %c0_44], %66 {strides = array<i32>} : memref<2x8xf32, #tpu.memory_space<vmem>>, vector<2x8xf32>,
    %c1_i32 = arith.constant 1 : i32
    %68 = arith.cmpi eq, %arg1, %c1_i32 : i32
    %69 = arith.extui %68 : i1 to i32
    %c0_i32_45 = arith.constant 0 : i32
    %70 = arith.cmpi ne, %69, %c0_i32_45 : i32
    scf.if %70 {
      %c0_46 = arith.constant 0 : index
      %c0_47 = arith.constant 0 : index
      %71 = vector.load %arg16[%c0_46, %c0_47] : memref<2x8xf32, #tpu.memory_space<vmem>>, vector<2x8xf32>
      %c0_48 = arith.constant 0 : index
      %c0_49 = arith.constant 0 : index
      %c0_50 = arith.constant 0 : index
      %72 = vector.load %arg14[%c0_48, %c0_49, %c0_50] : memref<1x2x8xf32, #tpu.memory_space<vmem>>, vector<1x2x8xf32>
      %73 = vector.shape_cast %72 : vector<1x2x8xf32> to vector<2x8xf32>
      %74 = vector.shape_cast %71 : vector<2x8xf32> to vector<1x2x8xf32>
      tpu.vector_store %arg14[%c0_48, %c0_49, %c0_50], %74 {strides = array<i32>} : memref<1x2x8xf32, #tpu.memory_space<vmem>>, vector<1x2x8xf32>,
      %c0_51 = arith.constant 0 : index
      %c0_52 = arith.constant 0 : index
      %75 = vector.load %arg17[%c0_51, %c0_52] : memref<1x2xf32, #tpu.memory_space<vmem>>, vector<1x2xf32>
      %c0_53 = arith.constant 0 : index
      %c0_54 = arith.constant 0 : index
      %c0_55 = arith.constant 0 : index
      %76 = vector.load %arg15[%c0_53, %c0_54, %c0_55] : memref<1x1x2xf32, #tpu.memory_space<vmem>>, vector<1x1x2xf32>
      %77 = vector.shape_cast %76 : vector<1x1x2xf32> to vector<1x2xf32>
      %78 = vector.shape_cast %75 : vector<1x2xf32> to vector<1x1x2xf32>
      tpu.vector_store %arg15[%c0_53, %c0_54, %c0_55], %78 {strides = array<i32>} : memref<1x1x2xf32, #tpu.memory_space<vmem>>, vector<1x1x2xf32>,
    } else {
    }
    return
  }
  func.func @transform_0(%arg0: i32, %arg1: i32) -> (i32, i32, i32) {
    %c0_i32 = arith.constant 0 : i32
    %c0_i32_0 = arith.constant 0 : i32
    return %arg0, %arg1, %c0_i32 : i32, i32, i32
  }
  func.func @transform_1(%arg0: i32, %arg1: i32) -> (i32, i32, i32) {
    %c0_i32 = arith.constant 0 : i32
    %c0_i32_0 = arith.constant 0 : i32
    %c0_i32_1 = arith.constant 0 : i32
    return %arg0, %c0_i32, %c0_i32_0 : i32, i32, i32
  }
  func.func @transform_2(%arg0: i32, %arg1: i32) -> (i32, i32) {
    %c0_i32 = arith.constant 0 : i32
    %c0_i32_0 = arith.constant 0 : i32
    %c0_i32_1 = arith.constant 0 : i32
    return %c0_i32, %c0_i32_0 : i32, i32
  }
  func.func @transform_3(%arg0: i32, %arg1: i32) -> (i32, i32) {
    %c0_i32 = arith.constant 0 : i32
    %c0_i32_0 = arith.constant 0 : i32
    %c0_i32_1 = arith.constant 0 : i32
    return %c0_i32, %c0_i32_0 : i32, i32
  }
  func.func @transform_4(%arg0: i32, %arg1: i32) -> (i32, i32) {
    %c0_i32 = arith.constant 0 : i32
    %c0_i32_0 = arith.constant 0 : i32
    %c0_i32_1 = arith.constant 0 : i32
    return %c0_i32, %c0_i32_0 : i32, i32
  }
  func.func @transform_5(%arg0: i32, %arg1: i32) -> (i32, i32) {
    %c0_i32 = arith.constant 0 : i32
    %c0_i32_0 = arith.constant 0 : i32
    %c0_i32_1 = arith.constant 0 : i32
    return %c0_i32, %c0_i32_0 : i32, i32
  }
  func.func @transform_6(%arg0: i32, %arg1: i32) -> (i32, i32) {
    %c0_i32 = arith.constant 0 : i32
    %c0_i32_0 = arith.constant 0 : i32
    %c0_i32_1 = arith.constant 0 : i32
    return %c0_i32, %c0_i32_0 : i32, i32
  }
  func.func @transform_7(%arg0: i32, %arg1: i32) -> (i32, i32) {
    %c0_i32 = arith.constant 0 : i32
    %c0_i32_0 = arith.constant 0 : i32
    %c0_i32_1 = arith.constant 0 : i32
    return %c0_i32, %c0_i32_0 : i32, i32
  }
  func.func @transform_8(%arg0: i32, %arg1: i32) -> (i32, i32) {
    %c0_i32 = arith.constant 0 : i32
    %c0_i32_0 = arith.constant 0 : i32
    %c0_i32_1 = arith.constant 0 : i32
    return %c0_i32, %c0_i32_0 : i32, i32
  }
  func.func @transform_9(%arg0: i32, %arg1: i32) -> (i32, i32) {
    %c0_i32 = arith.constant 0 : i32
    %c0_i32_0 = arith.constant 0 : i32
    %c0_i32_1 = arith.constant 0 : i32
    return %c0_i32, %c0_i32_0 : i32, i32
  }
  func.func @transform_10(%arg0: i32, %arg1: i32) -> (i32, i32) {
    %c0_i32 = arith.constant 0 : i32
    %c0_i32_0 = arith.constant 0 : i32
    %c0_i32_1 = arith.constant 0 : i32
    return %c0_i32, %c0_i32_0 : i32, i32
  }
  func.func @transform_11(%arg0: i32, %arg1: i32) -> (i32, i32, i32) {
    %c0_i32 = arith.constant 0 : i32
    %c0_i32_0 = arith.constant 0 : i32
    return %arg0, %arg1, %c0_i32 : i32, i32, i32
  }
  func.func @transform_12(%arg0: i32, %arg1: i32) -> (i32, i32, i32) {
    %c0_i32 = arith.constant 0 : i32
    %c0_i32_0 = arith.constant 0 : i32
    %c0_i32_1 = arith.constant 0 : i32
    return %arg0, %c0_i32, %c0_i32_0 : i32, i32, i32
  }
  func.func @transform_13(%arg0: i32, %arg1: i32) -> (i32, i32, i32) {
    %c0_i32 = arith.constant 0 : i32
    %c0_i32_0 = arith.constant 0 : i32
    %c0_i32_1 = arith.constant 0 : i32
    return %arg0, %c0_i32, %c0_i32_0 : i32, i32, i32
  }
}

module attributes {stable_mosaic.version = 11 : i64} {
  func.func @_nlce_attn_ft_kernel(%arg0: i32, %arg1: i32, %arg2: memref<1x32x16xbf16, #tpu.memory_space<vmem>>, %arg3: memref<16x8xbf16, #tpu.memory_space<vmem>>, %arg4: memref<1x8xf32, #tpu.memory_space<vmem>>, %arg5: memref<16x8xbf16, #tpu.memory_space<vmem>>, %arg6: memref<1x8xf32, #tpu.memory_space<vmem>>, %arg7: memref<1x8x8xbf16, #tpu.memory_space<vmem>>, %arg8: memref<8x8xf32, #tpu.memory_space<vmem>>) attributes {dimension_semantics = [#tpu.dimension_semantics<parallel>, #tpu.dimension_semantics<arbitrary>], iteration_bounds = array<i64: 2, 2>, scalar_prefetch = 0 : i64, scratch_operands = 1 : i64, tpu.core_type = #tpu.core_type<tc>, window_params = [{transform_indices = @transform_0, window_bounds = array<i64: 1, 32, 16>}, {pipeline_mode = #tpu.pipeline_mode<synchronous>, transform_indices = @transform_1, window_bounds = array<i64: 16, 8>}, {pipeline_mode = #tpu.pipeline_mode<synchronous>, transform_indices = @transform_2, window_bounds = array<i64: 1, 8>}, {pipeline_mode = #tpu.pipeline_mode<synchronous>, transform_indices = @transform_3, window_bounds = array<i64: 16, 8>}, {pipeline_mode = #tpu.pipeline_mode<synchronous>, transform_indices = @transform_4, window_bounds = array<i64: 1, 8>}, {transform_indices = @transform_5, window_bounds = array<i64: 1, 8, 8>}]} {
    %c0_i32 = arith.constant 0 : i32
    %0 = arith.cmpi eq, %arg1, %c0_i32 : i32
    %1 = arith.extui %0 : i1 to i32
    %c0_i32_0 = arith.constant 0 : i32
    %2 = arith.cmpi ne, %1, %c0_i32_0 : i32
    scf.if %2 {
      %cst_18 = arith.constant 0.000000e+00 : f32
      %24 = vector.broadcast %cst_18 : f32 to vector<8x8xf32>
      %c0_19 = arith.constant 0 : index
      %c0_20 = arith.constant 0 : index
      %25 = vector.load %arg8[%c0_19, %c0_20] : memref<8x8xf32, #tpu.memory_space<vmem>>, vector<8x8xf32>
      tpu.vector_store %arg8[%c0_19, %c0_20], %24 {strides = array<i32>} : memref<8x8xf32, #tpu.memory_space<vmem>>, vector<8x8xf32>,
    } else {
    }
    %c0 = arith.constant 0 : index
    %c0_1 = arith.constant 0 : index
    %c0_2 = arith.constant 0 : index
    %3 = vector.load %arg2[%c0, %c0_1, %c0_2] : memref<1x32x16xbf16, #tpu.memory_space<vmem>>, vector<1x32x16xbf16>
    %4 = vector.shape_cast %3 : vector<1x32x16xbf16> to vector<32x16xbf16>
    %c0_3 = arith.constant 0 : index
    %c0_4 = arith.constant 0 : index
    %5 = vector.load %arg3[%c0_3, %c0_4] : memref<16x8xbf16, #tpu.memory_space<vmem>>, vector<16x8xbf16>
    %cst = arith.constant dense<0.000000e+00> : vector<32x8xf32>
    %6 = tpu.matmul %4, %5, %cst {dimension_numbers = #tpu.dot_dimension_numbers<[1], [0], [0], [1], [0, 0, 1, 1], [], []>} : vector<32x16xbf16>, vector<16x8xbf16>, vector<32x8xf32> -> vector<32x8xf32>
    %c0_5 = arith.constant 0 : index
    %c0_6 = arith.constant 0 : index
    %7 = vector.load %arg4[%c0_5, %c0_6] : memref<1x8xf32, #tpu.memory_space<vmem>>, vector<1x8xf32>
    %8 = vector.broadcast %7 : vector<1x8xf32> to vector<32x8xf32>
    %9 = arith.addf %6, %8 : vector<32x8xf32>
    %10 = arith.truncf %9 : vector<32x8xf32> to vector<32x8xbf16>
    %c0_7 = arith.constant 0 : index
    %c0_8 = arith.constant 0 : index
    %11 = vector.load %arg5[%c0_7, %c0_8] : memref<16x8xbf16, #tpu.memory_space<vmem>>, vector<16x8xbf16>
    %cst_9 = arith.constant dense<0.000000e+00> : vector<32x8xf32>
    %12 = tpu.matmul %4, %11, %cst_9 {dimension_numbers = #tpu.dot_dimension_numbers<[1], [0], [0], [1], [0, 0, 1, 1], [], []>} : vector<32x16xbf16>, vector<16x8xbf16>, vector<32x8xf32> -> vector<32x8xf32>
    %c0_10 = arith.constant 0 : index
    %c0_11 = arith.constant 0 : index
    %13 = vector.load %arg6[%c0_10, %c0_11] : memref<1x8xf32, #tpu.memory_space<vmem>>, vector<1x8xf32>
    %14 = vector.broadcast %13 : vector<1x8xf32> to vector<32x8xf32>
    %15 = arith.addf %12, %14 : vector<32x8xf32>
    %16 = arith.truncf %15 : vector<32x8xf32> to vector<32x8xbf16>
    %c0_12 = arith.constant 0 : index
    %c0_13 = arith.constant 0 : index
    %17 = vector.load %arg8[%c0_12, %c0_13] : memref<8x8xf32, #tpu.memory_space<vmem>>, vector<8x8xf32>
    %cst_14 = arith.constant dense<0.000000e+00> : vector<8x8xf32>
    %18 = tpu.matmul %16, %10, %cst_14 {dimension_numbers = #tpu.dot_dimension_numbers<[0], [0], [1], [1], [0, 1, 1, 1], [], []>} : vector<32x8xbf16>, vector<32x8xbf16>, vector<8x8xf32> -> vector<8x8xf32>
    %19 = arith.addf %17, %18 : vector<8x8xf32>
    %c0_15 = arith.constant 0 : index
    %c0_16 = arith.constant 0 : index
    %20 = vector.load %arg8[%c0_15, %c0_16] : memref<8x8xf32, #tpu.memory_space<vmem>>, vector<8x8xf32>
    tpu.vector_store %arg8[%c0_15, %c0_16], %19 {strides = array<i32>} : memref<8x8xf32, #tpu.memory_space<vmem>>, vector<8x8xf32>,
    %c1_i32 = arith.constant 1 : i32
    %21 = arith.cmpi eq, %arg1, %c1_i32 : i32
    %22 = arith.extui %21 : i1 to i32
    %c0_i32_17 = arith.constant 0 : i32
    %23 = arith.cmpi ne, %22, %c0_i32_17 : i32
    scf.if %23 {
      %c0_18 = arith.constant 0 : index
      %c0_19 = arith.constant 0 : index
      %24 = vector.load %arg8[%c0_18, %c0_19] : memref<8x8xf32, #tpu.memory_space<vmem>>, vector<8x8xf32>
      %cst_20 = arith.constant dense<0xFF800000> : vector<8xf32>
      %25 = vector.multi_reduction <maximumf>, %24, %cst_20 [1] : vector<8x8xf32> to vector<8xf32>
      %26 = vector.shape_cast %25 : vector<8xf32> to vector<8x1xf32>
      %27 = vector.broadcast %26 : vector<8x1xf32> to vector<8x8xf32>
      %28 = arith.subf %24, %27 : vector<8x8xf32>
      %29 = math.exp %28 : vector<8x8xf32>
      %cst_21 = arith.constant dense<0.000000e+00> : vector<8xf32>
      %30 = vector.multi_reduction <add>, %29, %cst_21 [1] : vector<8x8xf32> to vector<8xf32>
      %31 = vector.shape_cast %30 : vector<8xf32> to vector<8x1xf32>
      %32 = tpu.reciprocal %31 {approx = true} : vector<8x1xf32> -> vector<8x1xf32>
      %33 = vector.broadcast %32 : vector<8x1xf32> to vector<8x8xf32>
      %34 = arith.mulf %29, %33 : vector<8x8xf32>
      %35 = arith.truncf %34 : vector<8x8xf32> to vector<8x8xbf16>
      %c0_22 = arith.constant 0 : index
      %c0_23 = arith.constant 0 : index
      %c0_24 = arith.constant 0 : index
      %36 = vector.load %arg7[%c0_22, %c0_23, %c0_24] : memref<1x8x8xbf16, #tpu.memory_space<vmem>>, vector<1x8x8xbf16>
      %37 = vector.shape_cast %36 : vector<1x8x8xbf16> to vector<8x8xbf16>
      %38 = vector.shape_cast %35 : vector<8x8xbf16> to vector<1x8x8xbf16>
      tpu.vector_store %arg7[%c0_22, %c0_23, %c0_24], %38 {strides = array<i32>} : memref<1x8x8xbf16, #tpu.memory_space<vmem>>, vector<1x8x8xbf16>,
    } else {
    }
    return
  }
  func.func @transform_0(%arg0: i32, %arg1: i32) -> (i32, i32, i32) {
    %c0_i32 = arith.constant 0 : i32
    %c0_i32_0 = arith.constant 0 : i32
    return %arg0, %arg1, %c0_i32 : i32, i32, i32
  }
  func.func @transform_1(%arg0: i32, %arg1: i32) -> (i32, i32) {
    %c0_i32 = arith.constant 0 : i32
    %c0_i32_0 = arith.constant 0 : i32
    %c0_i32_1 = arith.constant 0 : i32
    return %c0_i32, %c0_i32_0 : i32, i32
  }
  func.func @transform_2(%arg0: i32, %arg1: i32) -> (i32, i32) {
    %c0_i32 = arith.constant 0 : i32
    %c0_i32_0 = arith.constant 0 : i32
    %c0_i32_1 = arith.constant 0 : i32
    return %c0_i32, %c0_i32_0 : i32, i32
  }
  func.func @transform_3(%arg0: i32, %arg1: i32) -> (i32, i32) {
    %c0_i32 = arith.constant 0 : i32
    %c0_i32_0 = arith.constant 0 : i32
    %c0_i32_1 = arith.constant 0 : i32
    return %c0_i32, %c0_i32_0 : i32, i32
  }
  func.func @transform_4(%arg0: i32, %arg1: i32) -> (i32, i32) {
    %c0_i32 = arith.constant 0 : i32
    %c0_i32_0 = arith.constant 0 : i32
    %c0_i32_1 = arith.constant 0 : i32
    return %c0_i32, %c0_i32_0 : i32, i32
  }
  func.func @transform_5(%arg0: i32, %arg1: i32) -> (i32, i32, i32) {
    %c0_i32 = arith.constant 0 : i32
    %c0_i32_0 = arith.constant 0 : i32
    %c0_i32_1 = arith.constant 0 : i32
    return %arg0, %c0_i32, %c0_i32_0 : i32, i32, i32
  }
}

</mosaic_0001>

<llo_original>
// kernel: tile.9
$region0: #{tile.9}
  %s0 = inlined_call_operand.vmem [shape: f32[2,64,16], index: 0, kind: input, shape index: {}]
  %s1 = inlined_call_operand.vmem [shape: f32[2,16,8,8], index: 1, kind: output, shape index: {}]
  %v2 = vld [vmem:[%s0] sm:$0xff]
  %vm3 = vcmask 64512
  %4 = vst.msk [vmem:[%s1] ss:$2 sm:$0xff] %vm3, %v2
  %s5 = scalar_lea.vmem %s0, 8
  %v6 = vld [vmem:[%s5] sm:$0xff]
  %vm7 = vcmask 64512
  %s8 = scalar_lea.vmem %s1, 16
  %9 = vst.msk [vmem:[%s8] ss:$2 sm:$0xff] %vm7, %v6
  %s10 = scalar_lea.vmem %s0, 16
  %v11 = vld [vmem:[%s10] sm:$0xff]
  %vm12 = vcmask 64512
  %s13 = scalar_lea.vmem %s1, 32
  %14 = vst.msk [vmem:[%s13] ss:$2 sm:$0xff] %vm12, %v11
  %s15 = scalar_lea.vmem %s0, 24
  %v16 = vld [vmem:[%s15] sm:$0xff]
  %vm17 = vcmask 64512
  %s18 = scalar_lea.vmem %s1, 48
  %19 = vst.msk [vmem:[%s18] ss:$2 sm:$0xff] %vm17, %v16
  %s20 = scalar_lea.vmem %s0, 32
  %v21 = vld [vmem:[%s20] sm:$0xff]
  %vm22 = vcmask 64512
  %s23 = scalar_lea.vmem %s1, 64
  %24 = vst.msk [vmem:[%s23] ss:$2 sm:$0xff] %vm22, %v21
  %s25 = scalar_lea.vmem %s0, 40
  %v26 = vld [vmem:[%s25] sm:$0xff]
  %vm27 = vcmask 64512
  %s28 = scalar_lea.vmem %s1, 80
  %29 = vst.msk [vmem:[%s28] ss:$2 sm:$0xff] %vm27, %v26
  %s30 = scalar_lea.vmem %s0, 48
  %v31 = vld [vmem:[%s30] sm:$0xff]
  %vm32 = vcmask 64512
  %s33 = scalar_lea.vmem %s1, 96
  %34 = vst.msk [vmem:[%s33] ss:$2 sm:$0xff] %vm32, %v31
  %s35 = scalar_lea.vmem %s0, 56
  %v36 = vld [vmem:[%s35] sm:$0xff]
  %vm37 = vcmask 64512
  %s38 = scalar_lea.vmem %s1, 112
  %39 = vst.msk [vmem:[%s38] ss:$2 sm:$0xff] %vm37, %v36
  %s40 = scalar_lea.vmem %s0, 64
  %v41 = vld [vmem:[%s40] sm:$0xff]
  %vm42 = vcmask 64512
  %s43 = scalar_lea.vmem %s1, 128
  %44 = vst.msk [vmem:[%s43] ss:$2 sm:$0xff] %vm42, %v41
  %s45 = scalar_lea.vmem %s0, 72
  %v46 = vld [vmem:[%s45] sm:$0xff]
  %vm47 = vcmask 64512
  %s48 = scalar_lea.vmem %s1, 144
  %49 = vst.msk [vmem:[%s48] ss:$2 sm:$0xff] %vm47, %v46
  %s50 = scalar_lea.vmem %s0, 80
  %v51 = vld [vmem:[%s50] sm:$0xff]
  %vm52 = vcmask 64512
  %s53 = scalar_lea.vmem %s1, 160
  %54 = vst.msk [vmem:[%s53] ss:$2 sm:$0xff] %vm52, %v51
  %s55 = scalar_lea.vmem %s0, 88
  %v56 = vld [vmem:[%s55] sm:$0xff]
  %vm57 = vcmask 64512
  %s58 = scalar_lea.vmem %s1, 176
  %59 = vst.msk [vmem:[%s58] ss:$2 sm:$0xff] %vm57, %v56
  %s60 = scalar_lea.vmem %s0, 96
  %v61 = vld [vmem:[%s60] sm:$0xff]
  %vm62 = vcmask 64512
  %s63 = scalar_lea.vmem %s1, 192
  %64 = vst.msk [vmem:[%s63] ss:$2 sm:$0xff] %vm62, %v61
  %s65 = scalar_lea.vmem %s0, 104
  %v66 = vld [vmem:[%s65] sm:$0xff]
  %vm67 = vcmask 64512
  %s68 = scalar_lea.vmem %s1, 208
  %69 = vst.msk [vmem:[%s68] ss:$2 sm:$0xff] %vm67, %v66
  %s70 = scalar_lea.vmem %s0, 112
  %v71 = vld [vmem:[%s70] sm:$0xff]
  %vm72 = vcmask 64512
  %s73 = scalar_lea.vmem %s1, 224
  %74 = vst.msk [vmem:[%s73] ss:$2 sm:$0xff] %vm72, %v71
  %s75 = scalar_lea.vmem %s0, 120
  %v76 = vld [vmem:[%s75] sm:$0xff]
  %vm77 = vcmask 64512
  %s78 = scalar_lea.vmem %s1, 240
  %79 = vst.msk [vmem:[%s78] ss:$2 sm:$0xff] %vm77, %v76
  %v80 = vld [vmem:[%s0] sm:$0xff]
  %81 = vrot.lane.b32.xlu0 %v80, 120
  %v82 = vpop.permute.xlu0 %81
  %vm83 = vcmask 64512
  %s84 = scalar_lea.vmem %s1, 1
  %85 = vst.msk [vmem:[%s84] ss:$2 sm:$0xff] %vm83, %v82
  %s86 = scalar_lea.vmem %s0, 16
  %v87 = vld [vmem:[%s86] sm:$0xff]
  %88 = vrot.lane.b32.xlu0 %v87, 120
  %v89 = vpop.permute.xlu0 %88
  %vm90 = vcmask 64512
  %s91 = scalar_lea.vmem %s1, 33
  %92 = vst.msk [vmem:[%s91] ss:$2 sm:$0xff] %vm90, %v89
  %s93 = scalar_lea.vmem %s0, 32
  %v94 = vld [vmem:[%s93] sm:$0xff]
  %95 = vrot.lane.b32.xlu0 %v94, 120
  %v96 = vpop.permute.xlu0 %95
  %vm97 = vcmask 64512
  %s98 = scalar_lea.vmem %s1, 65
  %99 = vst.msk [vmem:[%s98] ss:$2 sm:$0xff] %vm97, %v96
  %s100 = scalar_lea.vmem %s0, 48
  %v101 = vld [vmem:[%s100] sm:$0xff]
  %102 = vrot.lane.b32.xlu0 %v101, 120
  %v103 = vpop.permute.xlu0 %102
  %vm104 = vcmask 64512
  %s105 = scalar_lea.vmem %s1, 97
  %106 = vst.msk [vmem:[%s105] ss:$2 sm:$0xff] %vm104, %v103
  %s107 = scalar_lea.vmem %s0, 64
  %v108 = vld [vmem:[%s107] sm:$0xff]
  %109 = vrot.lane.b32.xlu0 %v108, 120
  %v110 = vpop.permute.xlu0 %109
  %vm111 = vcmask 64512
  %s112 = scalar_lea.vmem %s1, 129
  %113 = vst.msk [vmem:[%s112] ss:$2 sm:$0xff] %vm111, %v110
  %s114 = scalar_lea.vmem %s0, 80
  %v115 = vld [vmem:[%s114] sm:$0xff]
  %116 = vrot.lane.b32.xlu0 %v115, 120
  %v117 = vpop.permute.xlu0 %116
  %vm118 = vcmask 64512
  %s119 = scalar_lea.vmem %s1, 161
  %120 = vst.msk [vmem:[%s119] ss:$2 sm:$0xff] %vm118, %v117
  %s121 = scalar_lea.vmem %s0, 96
  %v122 = vld [vmem:[%s121] sm:$0xff]
  %123 = vrot.lane.b32.xlu0 %v122, 120
  %v124 = vpop.permute.xlu0 %123
  %vm125 = vcmask 64512
  %s126 = scalar_lea.vmem %s1, 193
  %127 = vst.msk [vmem:[%s126] ss:$2 sm:$0xff] %vm125, %v124
  %s128 = scalar_lea.vmem %s0, 112
  %v129 = vld [vmem:[%s128] sm:$0xff]
  %130 = vrot.lane.b32.xlu0 %v129, 120
  %v131 = vpop.permute.xlu0 %130
  %vm132 = vcmask 64512
  %s133 = scalar_lea.vmem %s1, 225
  %134 = vst.msk [vmem:[%s133] ss:$2 sm:$0xff] %vm132, %v131
  %s135 = scalar_lea.vmem %s0, 8
  %v136 = vld [vmem:[%s135] sm:$0xff]
  %137 = vrot.lane.b32.xlu0 %v136, 120
  %v138 = vpop.permute.xlu0 %137
  %vm139 = vcmask 64512
  %s140 = scalar_lea.vmem %s1, 17
  %141 = vst.msk [vmem:[%s140] ss:$2 sm:$0xff] %vm139, %v138
  %s142 = scalar_lea.vmem %s0, 24
  %v143 = vld [vmem:[%s142] sm:$0xff]
  %144 = vrot.lane.b32.xlu0 %v143, 120
  %v145 = vpop.permute.xlu0 %144
  %vm146 = vcmask 64512
  %s147 = scalar_lea.vmem %s1, 49
  %148 = vst.msk [vmem:[%s147] ss:$2 sm:$0xff] %vm146, %v145
  %s149 = scalar_lea.vmem %s0, 40
  %v150 = vld [vmem:[%s149] sm:$0xff]
  %151 = vrot.lane.b32.xlu0 %v150, 120
  %v152 = vpop.permute.xlu0 %151
  %vm153 = vcmask 64512
  %s154 = scalar_lea.vmem %s1, 81
  %155 = vst.msk [vmem:[%s154] ss:$2 sm:$0xff] %vm153, %v152
  %s156 = scalar_lea.vmem %s0, 56
  %v157 = vld [vmem:[%s156] sm:$0xff]
  %158 = vrot.lane.b32.xlu0 %v157, 120
  %v159 = vpop.permute.xlu0 %158
  %vm160 = vcmask 64512
  %s161 = scalar_lea.vmem %s1, 113
  %162 = vst.msk [vmem:[%s161] ss:$2 sm:$0xff] %vm160, %v159
  %s163 = scalar_lea.vmem %s0, 72
  %v164 = vld [vmem:[%s163] sm:$0xff]
  %165 = vrot.lane.b32.xlu0 %v164, 120
  %v166 = vpop.permute.xlu0 %165
  %vm167 = vcmask 64512
  %s168 = scalar_lea.vmem %s1, 145
  %169 = vst.msk [vmem:[%s168] ss:$2 sm:$0xff] %vm167, %v166
  %s170 = scalar_lea.vmem %s0, 88
  %v171 = vld [vmem:[%s170] sm:$0xff]
  %172 = vrot.lane.b32.xlu0 %v171, 120
  %v173 = vpop.permute.xlu0 %172
  %vm174 = vcmask 64512
  %s175 = scalar_lea.vmem %s1, 177
  %176 = vst.msk [vmem:[%s175] ss:$2 sm:$0xff] %vm174, %v173
  %s177 = scalar_lea.vmem %s0, 104
  %v178 = vld [vmem:[%s177] sm:$0xff]
  %179 = vrot.lane.b32.xlu0 %v178, 120
  %v180 = vpop.permute.xlu0 %179
  %vm181 = vcmask 64512
  %s182 = scalar_lea.vmem %s1, 209
  %183 = vst.msk [vmem:[%s182] ss:$2 sm:$0xff] %vm181, %v180
  %s184 = scalar_lea.vmem %s0, 120
  %v185 = vld [vmem:[%s184] sm:$0xff]
  %186 = vrot.lane.b32.xlu0 %v185, 120
  %v187 = vpop.permute.xlu0 %186
  %vm188 = vcmask 64512
  %s189 = scalar_lea.vmem %s1, 241
  %190 = vst.msk [vmem:[%s189] ss:$2 sm:$0xff] %vm188, %v187

// kernel: nlce_forward.2
$region0: #{nlce_forward.2}
  #allocation0 [shape = 'u32[]', space=smem, size = 0x4, offset = 0x4, fixed_abs, tag = 'smem constant byte address 0x4 - core index']
  #allocation1 [shape = 'u32[72,128]{1,0:T(1,128)}', space=vmem, size = 0x9000, scoped, tag = 'internal scratch']
  #allocation2 [shape = 'f32[8,8]{1,0:T(8,128)}', space=vmem, size = 0x1000, scoped, tag = 'scratch operand']
  %s0 = inlined_call_operand.vmem [shape: bf16[2,64,16], index: 0, kind: input, shape index: {}]
  %s1 = inlined_call_operand.vmem [shape: bf16[16,8], index: 1, kind: input, shape index: {}]
  %s2 = inlined_call_operand.vmem [shape: f32[1,8], index: 2, kind: input, shape index: {}]
  %s3 = inlined_call_operand.vmem [shape: bf16[16,8], index: 3, kind: input, shape index: {}]
  %s4 = inlined_call_operand.vmem [shape: f32[1,8], index: 4, kind: input, shape index: {}]
  %s5 = inlined_call_operand.vmem [shape: bf16[2,8,8], index: 5, kind: output, shape index: {}]
  %s6 = sld [smem:[#allocation0]]
  $region61: #{nlce_forward.2} parent=0
    _
  %s8 = ssub.s32 1, %s6
  %s9 = scalar_select 0, %s8, %s6
  loop: start=0, step=1, limit=6
  $region2: #{nlce_forward.2} parent=0 // loop_pre_header
    _
  $region3: #{nlce_forward.2} parent=0 // loop_header
    %s11 = sphi 0, %s15
    %p12 = scmp.ge.s32.totalorder %s11, 6
    %s18 = sphi 0, %s30
    %s19 = sphi 0, %s26
    %s20 = sphi 0, %s18
    %s21 = sphi 0, %s19
    %s22 = sphi 0, %s20
    %s23 = sphi 0, %s21
    %s35 = sphi 0, %s37
    %s38 = sphi 0, %s35
    %s39 = sphi 0, %s38
    %s55 = sphi 0, %s39
    %s59 = sphi 0, %s59
    %s61 = sphi 0, %s59
    %s62 = sphi 0, %s61
    %s76 = sphi 0, %s62
    %s80 = sphi 0, %s80
    %s82 = sphi 0, %s80
    %s83 = sphi 0, %s82
    %s97 = sphi 0, %s83
    %s101 = sphi 0, %s101
    %s103 = sphi 0, %s101
    %s104 = sphi 0, %s103
    %s118 = sphi 0, %s104
    %s122 = sphi 0, %s122
    %s124 = sphi 0, %s122
    %s125 = sphi 0, %s124
    %s139 = sphi 0, %s125
    %s145 = sphi 0, %s147
    %s148 = sphi 0, %s145
    %s149 = sphi 0, %s148
    %s165 = sphi 0, %s149
  $region4: #{nlce_forward.2} parent=0 // loop_header_branch
    %14 = sbr.rel (%p12) target = $region8
  $region5: #{nlce_forward.2} parent=0 // loop_body
    %s16 = ssub.s32 %s11, 1
    %s17 = ssub.s32 %s11, 2
    %s24 = sadd.s32 1, %s19
    %p25 = scmp.ge.s32.totalorder %s24, 2
    %s26 = scalar_select %p25, 0, %s24
    %s27 = sadd.s32 1, %s18
    %s28 = scalar_select %p25, %s27, %s18
    %p29 = scmp.ge.s32.totalorder %s28, 2
    %s30 = scalar_select %p29, 0, %s28
    %s31 = ssub.s32 %s18, %s30
    %s32 = ssub.s32 %s19, %s26
    %s33 = sor.u32 %s31, %s32
    %p34 = scmp.eq.s32.totalorder %s33, 0
    %s36 = sadd.s32 %s35, 1
    %s37 = scalar_select %p34, %s35, %s36
    %p40 = pneg %p34
    %p41 = scmp.eq.s32.totalorder %s11, 3
    %p42 = por %p40, %p41
    %p43 = scmp.ne.s32.totalorder %s35, %s38
    %p44 = scmp.eq.s32.totalorder %s11, 0
    %p45 = por %p43, %p44
    %p46 = scmp.ne.s32.totalorder %s35, %s38
    %p47 = scmp.eq.s32.totalorder %s16, 3
    %p48 = por %p46, %p47
    %p49 = scmp.ne.s32.totalorder %s38, %s39
    %p50 = scmp.eq.s32.totalorder %s16, 0
    %p51 = por %p49, %p50
    %p52 = scmp.ne.s32.totalorder %s38, %s39
    %p53 = scmp.eq.s32.totalorder %s17, 3
    %p54 = por %p52, %p53
    %p56 = scmp.ne.s32.totalorder %s39, %s55
    %p57 = scmp.eq.s32.totalorder %s17, 0
    %p58 = por %p56, %p57
    %s60 = sadd.s32 %s59, 1
    %p63 = scmp.eq.s32.totalorder %s11, 3
    %p64 = scmp.ne.s32.totalorder %s59, %s61
    %p65 = scmp.eq.s32.totalorder %s11, 0
    %p66 = por %p64, %p65
    %p67 = scmp.ne.s32.totalorder %s59, %s61
    %p68 = scmp.eq.s32.totalorder %s16, 3
    %p69 = por %p67, %p68
    %p70 = scmp.ne.s32.totalorder %s61, %s62
    %p71 = scmp.eq.s32.totalorder %s16, 0
    %p72 = por %p70, %p71
    %p73 = scmp.ne.s32.totalorder %s61, %s62
    %p74 = scmp.eq.s32.totalorder %s17, 3
    %p75 = por %p73, %p74
    %p77 = scmp.ne.s32.totalorder %s62, %s76
    %p78 = scmp.eq.s32.totalorder %s17, 0
    %p79 = por %p77, %p78
    %s81 = sadd.s32 %s80, 1
    %p84 = scmp.eq.s32.totalorder %s11, 3
    %p85 = scmp.ne.s32.totalorder %s80, %s82
    %p86 = scmp.eq.s32.totalorder %s11, 0
    %p87 = por %p85, %p86
    %p88 = scmp.ne.s32.totalorder %s80, %s82
    %p89 = scmp.eq.s32.totalorder %s16, 3
    %p90 = por %p88, %p89
    %p91 = scmp.ne.s32.totalorder %s82, %s83
    %p92 = scmp.eq.s32.totalorder %s16, 0
    %p93 = por %p91, %p92
    %p94 = scmp.ne.s32.totalorder %s82, %s83
    %p95 = scmp.eq.s32.totalorder %s17, 3
    %p96 = por %p94, %p95
    %p98 = scmp.ne.s32.totalorder %s83, %s97
    %p99 = scmp.eq.s32.totalorder %s17, 0
    %p100 = por %p98, %p99
    %s102 = sadd.s32 %s101, 1
    %p105 = scmp.eq.s32.totalorder %s11, 3
    %p106 = scmp.ne.s32.totalorder %s101, %s103
    %p107 = scmp.eq.s32.totalorder %s11, 0
    %p108 = por %p106, %p107
    %p109 = scmp.ne.s32.totalorder %s101, %s103
    %p110 = scmp.eq.s32.totalorder %s16, 3
    %p111 = por %p109, %p110
    %p112 = scmp.ne.s32.totalorder %s103, %s104
    %p113 = scmp.eq.s32.totalorder %s16, 0
    %p114 = por %p112, %p113
    %p115 = scmp.ne.s32.totalorder %s103, %s104
    %p116 = scmp.eq.s32.totalorder %s17, 3
    %p117 = por %p115, %p116
    %p119 = scmp.ne.s32.totalorder %s104, %s118
    %p120 = scmp.eq.s32.totalorder %s17, 0
    %p121 = por %p119, %p120
    %s123 = sadd.s32 %s122, 1
    %p126 = scmp.eq.s32.totalorder %s11, 3
    %p127 = scmp.ne.s32.totalorder %s122, %s124
    %p128 = scmp.eq.s32.totalorder %s11, 0
    %p129 = por %p127, %p128
    %p130 = scmp.ne.s32.totalorder %s122, %s124
    %p131 = scmp.eq.s32.totalorder %s16, 3
    %p132 = por %p130, %p131
    %p133 = scmp.ne.s32.totalorder %s124, %s125
    %p134 = scmp.eq.s32.totalorder %s16, 0
    %p135 = por %p133, %p134
    %p136 = scmp.ne.s32.totalorder %s124, %s125
    %p137 = scmp.eq.s32.totalorder %s17, 3
    %p138 = por %p136, %p137
    %p140 = scmp.ne.s32.totalorder %s125, %s139
    %p141 = scmp.eq.s32.totalorder %s17, 0
    %p142 = por %p140, %p141
    %s143 = ssub.s32 %s18, %s30
    %p144 = scmp.eq.s32.totalorder %s143, 0
    %s146 = sadd.s32 %s145, 1
    %s147 = scalar_select %p144, %s145, %s146
    %p150 = pneg %p144
    %p151 = scmp.eq.s32.totalorder %s11, 3
    %p152 = por %p150, %p151
    %p153 = scmp.ne.s32.totalorder %s145, %s148
    %p154 = scmp.eq.s32.totalorder %s11, 0
    %p155 = por %p153, %p154
    %p156 = scmp.ne.s32.totalorder %s145, %s148
    %p157 = scmp.eq.s32.totalorder %s16, 3
    %p158 = por %p156, %p157
    %p159 = scmp.ne.s32.totalorder %s148, %s149
    %p160 = scmp.eq.s32.totalorder %s16, 0
    %p161 = por %p159, %p160
    %p162 = scmp.ne.s32.totalorder %s148, %s149
    %p163 = scmp.eq.s32.totalorder %s17, 3
    %p164 = por %p162, %p163
    %p166 = scmp.ne.s32.totalorder %s149, %s165
    %p167 = scmp.eq.s32.totalorder %s17, 0
    %p168 = por %p166, %p167
    %p169 = scmp.le.s32.totalorder 1, %s11
    %p170 = scmp.lt.s32.totalorder %s11, 5
    %p171 = pnand %p169, %p170
    %p172 = pneg %p171
    // Predicated region
    $region9: #{nlce_forward.2} parent=5 // pred_check
      _
    $region10: #{nlce_forward.2} parent=5 // pred_check_branch
      %174 = sbr.rel (%p171) target = $region12
    $region11: #{nlce_forward.2} parent=5 // pred_region
      %s175 = ssub.s32 %s11, 1
      // Predicated region
      $region13: #{nlce_forward.2} parent=11 // pred_check
        %p176 = pneg %p72
      $region14: #{nlce_forward.2} parent=11 // pred_check_branch
        %178 = sbr.rel (%p176) target = $region16
      $region15: #{nlce_forward.2} parent=11 // pred_region
        _
      $region16: #{nlce_forward.2} parent=11 // pred_fallthru
        _
      // Predicated region
      $region17: #{nlce_forward.2} parent=11 // pred_check
        %p179 = pneg %p93
      $region18: #{nlce_forward.2} parent=11 // pred_check_branch
        %181 = sbr.rel (%p179) target = $region20
      $region19: #{nlce_forward.2} parent=11 // pred_region
        _
      $region20: #{nlce_forward.2} parent=11 // pred_fallthru
        _
      // Predicated region
      $region21: #{nlce_forward.2} parent=11 // pred_check
        %p182 = pneg %p114
      $region22: #{nlce_forward.2} parent=11 // pred_check_branch
        %184 = sbr.rel (%p182) target = $region24
      $region23: #{nlce_forward.2} parent=11 // pred_region
        _
      $region24: #{nlce_forward.2} parent=11 // pred_fallthru
        _
      // Predicated region
      $region25: #{nlce_forward.2} parent=11 // pred_check
        %p185 = pneg %p135
      $region26: #{nlce_forward.2} parent=11 // pred_check_branch
        %187 = sbr.rel (%p185) target = $region28
      $region27: #{nlce_forward.2} parent=11 // pred_region
        _
      $region28: #{nlce_forward.2} parent=11 // pred_fallthru
        _
    $region12: #{nlce_forward.2} parent=5 // pred_fallthru
      _
    %p188 = scmp.lt.s32.totalorder %s11, 4
    // Predicated region
    $region29: #{nlce_forward.2} parent=5 // pred_check
      %p189 = pneg %p188
    $region30: #{nlce_forward.2} parent=5 // pred_check_branch
      %191 = sbr.rel (%p189) target = $region32
    $region31: #{nlce_forward.2} parent=5 // pred_region
      // Predicated region
      $region33: #{nlce_forward.2} parent=31 // pred_check
        %p192 = pneg %p45
      $region34: #{nlce_forward.2} parent=31 // pred_check_branch
        %194 = sbr.rel (%p192) target = $region36
      $region35: #{nlce_forward.2} parent=31 // pred_region
        %s195 = smul.u32 4, %s19
        %p196 = scmp.lt.s32.totalorder %s18, 1
        %s197 = scalar_select %p196, %s18, 1
        %p198 = scmp.lt.s32.totalorder %s195, 7
        %s199 = scalar_select %p198, %s195, 7
        %s200 = smul.addr %s197, 8
        %s201 = sadd.s32 %s199, %s200
        %s202 = smul.addr %s201, 4
        %s203 = scalar_lea.vmem %s0, %s202
        %s204 = smul.u32 4, %s19
      $region36: #{nlce_forward.2} parent=31 // pred_fallthru
        _
    $region32: #{nlce_forward.2} parent=5 // pred_fallthru
      _
    %p205 = scmp.le.s32.totalorder 1, %s11
    %p206 = scmp.lt.s32.totalorder %s11, 5
    %p207 = pnand %p205, %p206
    %p208 = pneg %p207
    // Predicated region
    $region37: #{nlce_forward.2} parent=5 // pred_check
      _
    $region38: #{nlce_forward.2} parent=5 // pred_check_branch
      %210 = sbr.rel (%p207) target = $region40
    $region39: #{nlce_forward.2} parent=5 // pred_region
      %s211 = ssub.s32 %s11, 1
      %s212 = smul.u32 4, %s21
      %p213 = scmp.lt.s32.totalorder %s20, 1
      %s214 = scalar_select %p213, %s20, 1
      %p215 = scmp.lt.s32.totalorder %s212, 7
      %s216 = scalar_select %p215, %s212, 7
      %s217 = smul.addr %s214, 8
      %s218 = sadd.s32 %s216, %s217
      %s219 = smul.addr %s218, 4
      %s220 = scalar_lea.vmem %s0, %s219
      %p221 = pneg %p51
      %p222 = pneg %p48
      %p223 = pneg %p72
      %p224 = pneg %p69
      %p225 = pneg %p93
      %p226 = pneg %p90
      %p227 = pneg %p114
      %p228 = pneg %p111
      %p229 = pneg %p135
      %p230 = pneg %p132
      %p231 = pneg %p161
      %p232 = pneg %p158
      %p233 = scmp.lt.s32.totalorder %s20, 1
      %s234 = scalar_select %p233, %s20, 1
      %s235 = smul.addr %s234, 4
      %s236 = scalar_lea.vmem %s5, %s235
      %s237 = smul.u32 4, %s21
      %p238 = scmp.lt.s32.totalorder %s20, 1
      %s239 = scalar_select %p238, %s20, 1
      %p240 = scmp.lt.s32.totalorder %s237, 7
      %s241 = scalar_select %p240, %s237, 7
      %s242 = smul.addr %s239, 8
      %s243 = sadd.s32 %s241, %s242
      %s244 = smul.addr %s243, 4
      %s245 = scalar_lea.vmem %s0, %s244
      %s246 = smul.u32 4, %s21
      %p247 = scmp.lt.s32.totalorder %s20, 1
      %s248 = scalar_select %p247, %s20, 1
      %s249 = smul.addr %s248, 4
      %s250 = scalar_lea.vmem %s5, %s249
      %p252 = scmp.eq.s32.totalorder %s21, 0
      // Predicated region
      $region41: #{nlce_forward.2} parent=39 // pred_check
        %p253 = pneg %p252
      $region42: #{nlce_forward.2} parent=39 // pred_check_branch
        %255 = sbr.rel (%p253) target = $region44
      $region43: #{nlce_forward.2} parent=39 // pred_region
        %vm256 = vcmask 64512
        %257 = vst.msk [vmem:[#allocation2] sm:$0xff] %vm256, 0.0
      $region44: #{nlce_forward.2} parent=39 // pred_fallthru
        _
      %v258 = vld [vmem:[%s245] sm:$0xf]
      %v259 = vld [vmem:[%s245 + $0x4] sm:$0xf]
      %v260 = vld [vmem:[%s245 + $0x8] sm:$0xf]
      %v261 = vld [vmem:[%s245 + $0xc] sm:$0xf]
      %v262 = vld [vmem:[%s1] sm:$0xf]
      %v263 = vld [vmem:[%s1 + $0x4] sm:$0xf]
      %v264 = vld [vmem:[%s2] sm:$0x1]
      %v266 = vperm.slane %v264, 0
      %v272 = vunpack.c.l.b16 %v258
      %v273 = vunpack.c.l.b16 %v259
      %v274 = vunpack.c.l.b16 %v260
      %v275 = vunpack.c.l.b16 %v261
      %v276 = vpack.c.b16 %v273, %v272
      %v277 = vpack.c.b16 %v275, %v274
      %v280 = vunpack.c.l.b16 %v262
      %v281 = vunpack.c.l.b16 %v263
      %v282 = vpack.c.b16 %v281, %v280
      %vm284 = vcmask 130048
      %v286 = vsel %vm284, %v276, 0
      %v289 = vsel %vm284, %v277, 0
      %291 = vmatpush.bf16.msra.mxu0 0
      %292 = vmatpush.bf16.msra.mxu0 0
      %293 = vmatpush.bf16.msra.mxu0 0
      %294 = vmatpush.bf16.msra.mxu0 0
      %295 = vmatpush.bf16.msra.mxu0 0
      %296 = vmatpush.bf16.msra.mxu0 0
      %297 = vmatpush.bf16.msra.mxu0 0
      %298 = vmatpush.bf16.msra.mxu0 %v282
      %299 = vmatmul.bf16.gmra.mxu0 %v286
      %v300 = vpop.f32.mrf.mxu0
      %v301 = vadd.f32 %v266, %v300
      %v302 = vpop.f32.mrf.mxu0
      %v303 = vadd.f32 %v266, %v302
      %304 = vmatmul.bf16.gmra.mxu0 %v289
      %v305 = vpop.f32.mrf.mxu0
      %v306 = vadd.f32 %v266, %v305
      %v307 = vpop.f32.mrf.mxu0
      %v308 = vadd.f32 %v266, %v307
      %309 = vdwg.mxu0
      %v310 = vpack.c.bf16 %v303, %v301
      %v311 = vpack.c.bf16 %v308, %v306
      %v312 = vld [vmem:[%s3] sm:$0xf]
      %v313 = vld [vmem:[%s3 + $0x4] sm:$0xf]
      %v314 = vld [vmem:[%s4] sm:$0x1]
      %v316 = vperm.slane %v314, 0
      %v320 = vunpack.c.l.b16 %v312
      %v321 = vunpack.c.l.b16 %v313
      %v322 = vpack.c.b16 %v321, %v320
      %324 = vmatpush.bf16.msra.mxu0 0
      %325 = vmatpush.bf16.msra.mxu0 0
      %326 = vmatpush.bf16.msra.mxu0 0
      %327 = vmatpush.bf16.msra.mxu0 0
      %328 = vmatpush.bf16.msra.mxu0 0
      %329 = vmatpush.bf16.msra.mxu0 0
      %330 = vmatpush.bf16.msra.mxu0 0
      %331 = vmatpush.bf16.msra.mxu0 %v322
      %332 = vmatmul.bf16.gmra.mxu0 %v286
      %v333 = vpop.f32.mrf.mxu0
      %v334 = vadd.f32 %v316, %v333
      %v335 = vpop.f32.mrf.mxu0
      %v336 = vadd.f32 %v316, %v335
      %337 = vmatmul.bf16.gmra.mxu0 %v289
      %v338 = vpop.f32.mrf.mxu0
      %v339 = vadd.f32 %v316, %v338
      %v340 = vpop.f32.mrf.mxu0
      %v341 = vadd.f32 %v316, %v340
      %342 = vdwg.mxu0
      %v343 = vpack.c.bf16 %v336, %v334
      %v344 = vpack.c.bf16 %v341, %v339
      %v345 = vld [vmem:[#allocation2] sm:$0xff]
      %346 = vxpose.xlu0.c.b16.start [1/8] %v343, 128
      %347 = vxpose.xlu0.c.b16.cont [2/8] %v344, 128
      %348 = vxpose.xlu0.c.b16.cont [3/8] 0, 128
      %349 = vxpose.xlu0.c.b16.cont [4/8] 0, 128
      %350 = vxpose.xlu0.c.b16.cont [5/8] 0, 128
      %351 = vxpose.xlu0.c.b16.cont [6/8] 0, 128
      %352 = vxpose.xlu0.c.b16.cont [7/8] 0, 128
      %353 = vxpose.xlu0.c.b16.end [8/8] 0, 128
      %v354 = vpop.trf.xlu0
      %v355 = vpop.trf.xlu0
      %v356 = vpop.trf.xlu0
      %v357 = vpop.trf.xlu0
      %v358 = vpop.trf.xlu0
      %v359 = vpop.trf.xlu0
      %v360 = vpop.trf.xlu0
      %v361 = vpop.trf.xlu0
      %vm362 = vcmask 261120
      %v364 = vsel %vm362, %v354, 0
      %366 = vmatpush.bf16.msra.mxu0 0
      %367 = vmatpush.bf16.msra.mxu0 0
      %368 = vmatpush.bf16.msra.mxu0 0
      %369 = vmatpush.bf16.msra.mxu0 0
      %370 = vmatpush.bf16.msra.mxu0 0
      %371 = vmatpush.bf16.msra.mxu0 0
      %372 = vmatpush.bf16.msra.mxu0 %v311
      %373 = vmatpush.bf16.msra.mxu0 %v310
      %374 = vmatmul.bf16.gmra.mxu0 %v364
      %v375 = vpop.f32.mrf.mxu0
      %v376 = vadd.f32 0.0, %v375
      %v377 = vpop.f32.mrf.mxu0
      %378 = vdwg.mxu0
      %v379 = vadd.f32 %v345, %v376
      %vm380 = vcmask 64512
      %381 = vst.msk [vmem:[#allocation2] sm:$0xff] %vm380, %v379
      %p382 = scmp.eq.s32.totalorder %s21, 1
      // Predicated region
      $region45: #{nlce_forward.2} parent=39 // pred_check
        %p383 = pneg %p382
      $region46: #{nlce_forward.2} parent=39 // pred_check_branch
        %385 = sbr.rel (%p383) target = $region48
      $region47: #{nlce_forward.2} parent=39 // pred_region
        %v386 = vld [vmem:[#allocation2] sm:$0xff]
        %v387 = vsel %vm380, %v386, -inf
        %388 = vmax.xlane.f32.xlu0 %v387
        %v389 = vpop.xlane.xlu0 %388
        %v390 = vsub.f32 %v386, %v389
        %v391 = vmul.f32 %v390, 1.442695
        %v392 = vpow.pop %v391
        %v393 = vsel %vm380, %v392, 0.0
        %394 = vadd.xlane.f32.xlu0 %v393
        %v395 = vpop.xlane.xlu0 %394
        %v396 = vrcp.pop %v395
        %v397 = vmul.f32 %v392, %v396
        %v398 = vpack.c.bf16 %v397, %v397
        %vm399 = vcmask 60416
        %400 = vst.msk [vmem:[%s250] sm:$0xf] %vm399, %v398
      $region48: #{nlce_forward.2} parent=39 // pred_fallthru
        _
      %p401 = scmp.lt.s32.totalorder %s20, 1
      %s402 = scalar_select %p401, %s20, 1
      %s403 = smul.addr %s402, 4
      %s404 = scalar_lea.vmem %s5, %s403
      // Predicated region
      $region49: #{nlce_forward.2} parent=39 // pred_check
        %p405 = pneg %p158
      $region50: #{nlce_forward.2} parent=39 // pred_check_branch
        %407 = sbr.rel (%p405) target = $region52
      $region51: #{nlce_forward.2} parent=39 // pred_region
        _
      $region52: #{nlce_forward.2} parent=39 // pred_fallthru
        _
    $region40: #{nlce_forward.2} parent=5 // pred_fallthru
      _
    %p408 = scmp.le.s32.totalorder 2, %s11
    // Predicated region
    $region53: #{nlce_forward.2} parent=5 // pred_check
      %p409 = pneg %p408
    $region54: #{nlce_forward.2} parent=5 // pred_check_branch
      %411 = sbr.rel (%p409) target = $region56
    $region55: #{nlce_forward.2} parent=5 // pred_region
      %s412 = ssub.s32 %s11, 2
      // Predicated region
      $region57: #{nlce_forward.2} parent=55 // pred_check
        %p413 = pneg %p164
      $region58: #{nlce_forward.2} parent=55 // pred_check_branch
        %415 = sbr.rel (%p413) target = $region60
      $region59: #{nlce_forward.2} parent=55 // pred_region
        %p416 = scmp.lt.s32.totalorder %s22, 1
        %s417 = scalar_select %p416, %s22, 1
        %s418 = smul.addr %s417, 4
        %s419 = scalar_lea.vmem %s5, %s418
      $region60: #{nlce_forward.2} parent=55 // pred_fallthru
        _
    $region56: #{nlce_forward.2} parent=5 // pred_fallthru
      _
  $region6: #{nlce_forward.2} parent=0 // loop_footer
    %s15 = sadd.s32 1, %s11
  $region7: #{nlce_forward.2} parent=0 // loop_footer_branch
    %10 = sbr.rel target = $region3
  $region8: #{nlce_forward.2} parent=0 // loop_exit
    _

// kernel: nlce_forward.3
$region0: #{nlce_forward.3}
  #allocation0 [shape = 'u32[]', space=smem, size = 0x4, offset = 0x4, fixed_abs, tag = 'smem constant byte address 0x4 - core index']
  #allocation1 [shape = 'u32[72,128]{1,0:T(1,128)}', space=vmem, size = 0x9000, scoped, tag = 'internal scratch']
  #allocation2 [shape = 'f32[2,8]{1,0:T(2,128)}', space=vmem, size = 0x400, scoped, tag = 'scratch operand']
  #allocation3 [shape = 'f32[1,2]{1,0:T(1,128)}', space=vmem, size = 0x200, scoped, tag = 'scratch operand']
  %s0 = inlined_call_operand.vmem [shape: bf16[2,64,16], index: 0, kind: input, shape index: {}]
  %s1 = inlined_call_operand.vmem [shape: bf16[2,8,8], index: 1, kind: input, shape index: {}]
  %s2 = inlined_call_operand.vmem [shape: bf16[16,8], index: 2, kind: input, shape index: {}]
  %s3 = inlined_call_operand.vmem [shape: f32[1,8], index: 3, kind: input, shape index: {}]
  %s4 = inlined_call_operand.vmem [shape: bf16[8,16], index: 4, kind: input, shape index: {}]
  %s5 = inlined_call_operand.vmem [shape: f32[1,16], index: 5, kind: input, shape index: {}]
  %s6 = inlined_call_operand.vmem [shape: bf16[16,8], index: 6, kind: input, shape index: {}]
  %s7 = inlined_call_operand.vmem [shape: f32[1,8], index: 7, kind: input, shape index: {}]
  %s8 = inlined_call_operand.vmem [shape: bf16[8,2], index: 8, kind: input, shape index: {}]
  %s9 = inlined_call_operand.vmem [shape: f32[1,2], index: 9, kind: input, shape index: {}]
  %s10 = inlined_call_operand.vmem [shape: f32[1,2], index: 10, kind: input, shape index: {}]
  %s11 = inlined_call_operand.vmem [shape: bf16[2,64,16], index: 11, kind: output, shape index: {0}]
  %s12 = inlined_call_operand.vmem [shape: f32[2,2,8], index: 12, kind: output, shape index: {1}]
  %s13 = inlined_call_operand.vmem [shape: f32[2,1,2], index: 13, kind: output, shape index: {2}]
  %14 = xla_tuple %s11, %s12, %s13
  %s15 = sld [smem:[#allocation0]]
  $region101: #{nlce_forward.3} parent=0
    _
  %s17 = ssub.s32 1, %s15
  %s18 = scalar_select 0, %s17, %s15
  loop: start=0, step=1, limit=6
  $region2: #{nlce_forward.3} parent=0 // loop_pre_header
    _
  $region3: #{nlce_forward.3} parent=0 // loop_header
    %s20 = sphi 0, %s24
    %p21 = scmp.ge.s32.totalorder %s20, 6
    %s27 = sphi 0, %s39
    %s28 = sphi 0, %s35
    %s29 = sphi 0, %s27
    %s30 = sphi 0, %s28
    %s31 = sphi 0, %s29
    %s32 = sphi 0, %s30
    %s44 = sphi 0, %s46
    %s47 = sphi 0, %s44
    %s48 = sphi 0, %s47
    %s64 = sphi 0, %s48
    %s70 = sphi 0, %s72
    %s73 = sphi 0, %s70
    %s74 = sphi 0, %s73
    %s90 = sphi 0, %s74
    %s94 = sphi 0, %s94
    %s96 = sphi 0, %s94
    %s97 = sphi 0, %s96
    %s111 = sphi 0, %s97
    %s115 = sphi 0, %s115
    %s117 = sphi 0, %s115
    %s118 = sphi 0, %s117
    %s132 = sphi 0, %s118
    %s136 = sphi 0, %s136
    %s138 = sphi 0, %s136
    %s139 = sphi 0, %s138
    %s153 = sphi 0, %s139
    %s157 = sphi 0, %s157
    %s159 = sphi 0, %s157
    %s160 = sphi 0, %s159
    %s174 = sphi 0, %s160
    %s178 = sphi 0, %s178
    %s180 = sphi 0, %s178
    %s181 = sphi 0, %s180
    %s195 = sphi 0, %s181
    %s199 = sphi 0, %s199
    %s201 = sphi 0, %s199
    %s202 = sphi 0, %s201
    %s216 = sphi 0, %s202
    %s220 = sphi 0, %s220
    %s222 = sphi 0, %s220
    %s223 = sphi 0, %s222
    %s237 = sphi 0, %s223
    %s241 = sphi 0, %s241
    %s243 = sphi 0, %s241
    %s244 = sphi 0, %s243
    %s258 = sphi 0, %s244
    %s262 = sphi 0, %s262
    %s264 = sphi 0, %s262
    %s265 = sphi 0, %s264
    %s279 = sphi 0, %s265
    %s287 = sphi 0, %s289
    %s290 = sphi 0, %s287
    %s291 = sphi 0, %s290
    %s307 = sphi 0, %s291
    %s313 = sphi 0, %s315
    %s316 = sphi 0, %s313
    %s317 = sphi 0, %s316
    %s333 = sphi 0, %s317
    %s339 = sphi 0, %s341
    %s342 = sphi 0, %s339
    %s343 = sphi 0, %s342
    %s359 = sphi 0, %s343
  $region4: #{nlce_forward.3} parent=0 // loop_header_branch
    %23 = sbr.rel (%p21) target = $region8
  $region5: #{nlce_forward.3} parent=0 // loop_body
    %s25 = ssub.s32 %s20, 1
    %s26 = ssub.s32 %s20, 2
    %s33 = sadd.s32 1, %s28
    %p34 = scmp.ge.s32.totalorder %s33, 2
    %s35 = scalar_select %p34, 0, %s33
    %s36 = sadd.s32 1, %s27
    %s37 = scalar_select %p34, %s36, %s27
    %p38 = scmp.ge.s32.totalorder %s37, 2
    %s39 = scalar_select %p38, 0, %s37
    %s40 = ssub.s32 %s27, %s39
    %s41 = ssub.s32 %s28, %s35
    %s42 = sor.u32 %s40, %s41
    %p43 = scmp.eq.s32.totalorder %s42, 0
    %s45 = sadd.s32 %s44, 1
    %s46 = scalar_select %p43, %s44, %s45
    %p49 = pneg %p43
    %p50 = scmp.eq.s32.totalorder %s20, 3
    %p51 = por %p49, %p50
    %p52 = scmp.ne.s32.totalorder %s44, %s47
    %p53 = scmp.eq.s32.totalorder %s20, 0
    %p54 = por %p52, %p53
    %p55 = scmp.ne.s32.totalorder %s44, %s47
    %p56 = scmp.eq.s32.totalorder %s25, 3
    %p57 = por %p55, %p56
    %p58 = scmp.ne.s32.totalorder %s47, %s48
    %p59 = scmp.eq.s32.totalorder %s25, 0
    %p60 = por %p58, %p59
    %p61 = scmp.ne.s32.totalorder %s47, %s48
    %p62 = scmp.eq.s32.totalorder %s26, 3
    %p63 = por %p61, %p62
    %p65 = scmp.ne.s32.totalorder %s48, %s64
    %p66 = scmp.eq.s32.totalorder %s26, 0
    %p67 = por %p65, %p66
    %s68 = ssub.s32 %s27, %s39
    %p69 = scmp.eq.s32.totalorder %s68, 0
    %s71 = sadd.s32 %s70, 1
    %s72 = scalar_select %p69, %s70, %s71
    %p75 = pneg %p69
    %p76 = scmp.eq.s32.totalorder %s20, 3
    %p77 = por %p75, %p76
    %p78 = scmp.ne.s32.totalorder %s70, %s73
    %p79 = scmp.eq.s32.totalorder %s20, 0
    %p80 = por %p78, %p79
    %p81 = scmp.ne.s32.totalorder %s70, %s73
    %p82 = scmp.eq.s32.totalorder %s25, 3
    %p83 = por %p81, %p82
    %p84 = scmp.ne.s32.totalorder %s73, %s74
    %p85 = scmp.eq.s32.totalorder %s25, 0
    %p86 = por %p84, %p85
    %p87 = scmp.ne.s32.totalorder %s73, %s74
    %p88 = scmp.eq.s32.totalorder %s26, 3
    %p89 = por %p87, %p88
    %p91 = scmp.ne.s32.totalorder %s74, %s90
    %p92 = scmp.eq.s32.totalorder %s26, 0
    %p93 = por %p91, %p92
    %s95 = sadd.s32 %s94, 1
    %p98 = scmp.eq.s32.totalorder %s20, 3
    %p99 = scmp.ne.s32.totalorder %s94, %s96
    %p100 = scmp.eq.s32.totalorder %s20, 0
    %p101 = por %p99, %p100
    %p102 = scmp.ne.s32.totalorder %s94, %s96
    %p103 = scmp.eq.s32.totalorder %s25, 3
    %p104 = por %p102, %p103
    %p105 = scmp.ne.s32.totalorder %s96, %s97
    %p106 = scmp.eq.s32.totalorder %s25, 0
    %p107 = por %p105, %p106
    %p108 = scmp.ne.s32.totalorder %s96, %s97
    %p109 = scmp.eq.s32.totalorder %s26, 3
    %p110 = por %p108, %p109
    %p112 = scmp.ne.s32.totalorder %s97, %s111
    %p113 = scmp.eq.s32.totalorder %s26, 0
    %p114 = por %p112, %p113
    %s116 = sadd.s32 %s115, 1
    %p119 = scmp.eq.s32.totalorder %s20, 3
    %p120 = scmp.ne.s32.totalorder %s115, %s117
    %p121 = scmp.eq.s32.totalorder %s20, 0
    %p122 = por %p120, %p121
    %p123 = scmp.ne.s32.totalorder %s115, %s117
    %p124 = scmp.eq.s32.totalorder %s25, 3
    %p125 = por %p123, %p124
    %p126 = scmp.ne.s32.totalorder %s117, %s118
    %p127 = scmp.eq.s32.totalorder %s25, 0
    %p128 = por %p126, %p127
    %p129 = scmp.ne.s32.totalorder %s117, %s118
    %p130 = scmp.eq.s32.totalorder %s26, 3
    %p131 = por %p129, %p130
    %p133 = scmp.ne.s32.totalorder %s118, %s132
    %p134 = scmp.eq.s32.totalorder %s26, 0
    %p135 = por %p133, %p134
    %s137 = sadd.s32 %s136, 1
    %p140 = scmp.eq.s32.totalorder %s20, 3
    %p141 = scmp.ne.s32.totalorder %s136, %s138
    %p142 = scmp.eq.s32.totalorder %s20, 0
    %p143 = por %p141, %p142
    %p144 = scmp.ne.s32.totalorder %s136, %s138
    %p145 = scmp.eq.s32.totalorder %s25, 3
    %p146 = por %p144, %p145
    %p147 = scmp.ne.s32.totalorder %s138, %s139
    %p148 = scmp.eq.s32.totalorder %s25, 0
    %p149 = por %p147, %p148
    %p150 = scmp.ne.s32.totalorder %s138, %s139
    %p151 = scmp.eq.s32.totalorder %s26, 3
    %p152 = por %p150, %p151
    %p154 = scmp.ne.s32.totalorder %s139, %s153
    %p155 = scmp.eq.s32.totalorder %s26, 0
    %p156 = por %p154, %p155
    %s158 = sadd.s32 %s157, 1
    %p161 = scmp.eq.s32.totalorder %s20, 3
    %p162 = scmp.ne.s32.totalorder %s157, %s159
    %p163 = scmp.eq.s32.totalorder %s20, 0
    %p164 = por %p162, %p163
    %p165 = scmp.ne.s32.totalorder %s157, %s159
    %p166 = scmp.eq.s32.totalorder %s25, 3
    %p167 = por %p165, %p166
    %p168 = scmp.ne.s32.totalorder %s159, %s160
    %p169 = scmp.eq.s32.totalorder %s25, 0
    %p170 = por %p168, %p169
    %p171 = scmp.ne.s32.totalorder %s159, %s160
    %p172 = scmp.eq.s32.totalorder %s26, 3
    %p173 = por %p171, %p172
    %p175 = scmp.ne.s32.totalorder %s160, %s174
    %p176 = scmp.eq.s32.totalorder %s26, 0
    %p177 = por %p175, %p176
    %s179 = sadd.s32 %s178, 1
    %p182 = scmp.eq.s32.totalorder %s20, 3
    %p183 = scmp.ne.s32.totalorder %s178, %s180
    %p184 = scmp.eq.s32.totalorder %s20, 0
    %p185 = por %p183, %p184
    %p186 = scmp.ne.s32.totalorder %s178, %s180
    %p187 = scmp.eq.s32.totalorder %s25, 3
    %p188 = por %p186, %p187
    %p189 = scmp.ne.s32.totalorder %s180, %s181
    %p190 = scmp.eq.s32.totalorder %s25, 0
    %p191 = por %p189, %p190
    %p192 = scmp.ne.s32.totalorder %s180, %s181
    %p193 = scmp.eq.s32.totalorder %s26, 3
    %p194 = por %p192, %p193
    %p196 = scmp.ne.s32.totalorder %s181, %s195
    %p197 = scmp.eq.s32.totalorder %s26, 0
    %p198 = por %p196, %p197
    %s200 = sadd.s32 %s199, 1
    %p203 = scmp.eq.s32.totalorder %s20, 3
    %p204 = scmp.ne.s32.totalorder %s199, %s201
    %p205 = scmp.eq.s32.totalorder %s20, 0
    %p206 = por %p204, %p205
    %p207 = scmp.ne.s32.totalorder %s199, %s201
    %p208 = scmp.eq.s32.totalorder %s25, 3
    %p209 = por %p207, %p208
    %p210 = scmp.ne.s32.totalorder %s201, %s202
    %p211 = scmp.eq.s32.totalorder %s25, 0
    %p212 = por %p210, %p211
    %p213 = scmp.ne.s32.totalorder %s201, %s202
    %p214 = scmp.eq.s32.totalorder %s26, 3
    %p215 = por %p213, %p214
    %p217 = scmp.ne.s32.totalorder %s202, %s216
    %p218 = scmp.eq.s32.totalorder %s26, 0
    %p219 = por %p217, %p218
    %s221 = sadd.s32 %s220, 1
    %p224 = scmp.eq.s32.totalorder %s20, 3
    %p225 = scmp.ne.s32.totalorder %s220, %s222
    %p226 = scmp.eq.s32.totalorder %s20, 0
    %p227 = por %p225, %p226
    %p228 = scmp.ne.s32.totalorder %s220, %s222
    %p229 = scmp.eq.s32.totalorder %s25, 3
    %p230 = por %p228, %p229
    %p231 = scmp.ne.s32.totalorder %s222, %s223
    %p232 = scmp.eq.s32.totalorder %s25, 0
    %p233 = por %p231, %p232
    %p234 = scmp.ne.s32.totalorder %s222, %s223
    %p235 = scmp.eq.s32.totalorder %s26, 3
    %p236 = por %p234, %p235
    %p238 = scmp.ne.s32.totalorder %s223, %s237
    %p239 = scmp.eq.s32.totalorder %s26, 0
    %p240 = por %p238, %p239
    %s242 = sadd.s32 %s241, 1
    %p245 = scmp.eq.s32.totalorder %s20, 3
    %p246 = scmp.ne.s32.totalorder %s241, %s243
    %p247 = scmp.eq.s32.totalorder %s20, 0
    %p248 = por %p246, %p247
    %p249 = scmp.ne.s32.totalorder %s241, %s243
    %p250 = scmp.eq.s32.totalorder %s25, 3
    %p251 = por %p249, %p250
    %p252 = scmp.ne.s32.totalorder %s243, %s244
    %p253 = scmp.eq.s32.totalorder %s25, 0
    %p254 = por %p252, %p253
    %p255 = scmp.ne.s32.totalorder %s243, %s244
    %p256 = scmp.eq.s32.totalorder %s26, 3
    %p257 = por %p255, %p256
    %p259 = scmp.ne.s32.totalorder %s244, %s258
    %p260 = scmp.eq.s32.totalorder %s26, 0
    %p261 = por %p259, %p260
    %s263 = sadd.s32 %s262, 1
    %p266 = scmp.eq.s32.totalorder %s20, 3
    %p267 = scmp.ne.s32.totalorder %s262, %s264
    %p268 = scmp.eq.s32.totalorder %s20, 0
    %p269 = por %p267, %p268
    %p270 = scmp.ne.s32.totalorder %s262, %s264
    %p271 = scmp.eq.s32.totalorder %s25, 3
    %p272 = por %p270, %p271
    %p273 = scmp.ne.s32.totalorder %s264, %s265
    %p274 = scmp.eq.s32.totalorder %s25, 0
    %p275 = por %p273, %p274
    %p276 = scmp.ne.s32.totalorder %s264, %s265
    %p277 = scmp.eq.s32.totalorder %s26, 3
    %p278 = por %p276, %p277
    %p280 = scmp.ne.s32.totalorder %s265, %s279
    %p281 = scmp.eq.s32.totalorder %s26, 0
    %p282 = por %p280, %p281
    %s283 = ssub.s32 %s27, %s39
    %s284 = ssub.s32 %s28, %s35
    %s285 = sor.u32 %s283, %s284
    %p286 = scmp.eq.s32.totalorder %s285, 0
    %s288 = sadd.s32 %s287, 1
    %s289 = scalar_select %p286, %s287, %s288
    %p292 = pneg %p286
    %p293 = scmp.eq.s32.totalorder %s20, 3
    %p294 = por %p292, %p293
    %p295 = scmp.ne.s32.totalorder %s287, %s290
    %p296 = scmp.eq.s32.totalorder %s20, 0
    %p297 = por %p295, %p296
    %p298 = scmp.ne.s32.totalorder %s287, %s290
    %p299 = scmp.eq.s32.totalorder %s25, 3
    %p300 = por %p298, %p299
    %p301 = scmp.ne.s32.totalorder %s290, %s291
    %p302 = scmp.eq.s32.totalorder %s25, 0
    %p303 = por %p301, %p302
    %p304 = scmp.ne.s32.totalorder %s290, %s291
    %p305 = scmp.eq.s32.totalorder %s26, 3
    %p306 = por %p304, %p305
    %p308 = scmp.ne.s32.totalorder %s291, %s307
    %p309 = scmp.eq.s32.totalorder %s26, 0
    %p310 = por %p308, %p309
    %s311 = ssub.s32 %s27, %s39
    %p312 = scmp.eq.s32.totalorder %s311, 0
    %s314 = sadd.s32 %s313, 1
    %s315 = scalar_select %p312, %s313, %s314
    %p318 = pneg %p312
    %p319 = scmp.eq.s32.totalorder %s20, 3
    %p320 = por %p318, %p319
    %p321 = scmp.ne.s32.totalorder %s313, %s316
    %p322 = scmp.eq.s32.totalorder %s20, 0
    %p323 = por %p321, %p322
    %p324 = scmp.ne.s32.totalorder %s313, %s316
    %p325 = scmp.eq.s32.totalorder %s25, 3
    %p326 = por %p324, %p325
    %p327 = scmp.ne.s32.totalorder %s316, %s317
    %p328 = scmp.eq.s32.totalorder %s25, 0
    %p329 = por %p327, %p328
    %p330 = scmp.ne.s32.totalorder %s316, %s317
    %p331 = scmp.eq.s32.totalorder %s26, 3
    %p332 = por %p330, %p331
    %p334 = scmp.ne.s32.totalorder %s317, %s333
    %p335 = scmp.eq.s32.totalorder %s26, 0
    %p336 = por %p334, %p335
    %s337 = ssub.s32 %s27, %s39
    %p338 = scmp.eq.s32.totalorder %s337, 0
    %s340 = sadd.s32 %s339, 1
    %s341 = scalar_select %p338, %s339, %s340
    %p344 = pneg %p338
    %p345 = scmp.eq.s32.totalorder %s20, 3
    %p346 = por %p344, %p345
    %p347 = scmp.ne.s32.totalorder %s339, %s342
    %p348 = scmp.eq.s32.totalorder %s20, 0
    %p349 = por %p347, %p348
    %p350 = scmp.ne.s32.totalorder %s339, %s342
    %p351 = scmp.eq.s32.totalorder %s25, 3
    %p352 = por %p350, %p351
    %p353 = scmp.ne.s32.totalorder %s342, %s343
    %p354 = scmp.eq.s32.totalorder %s25, 0
    %p355 = por %p353, %p354
    %p356 = scmp.ne.s32.totalorder %s342, %s343
    %p357 = scmp.eq.s32.totalorder %s26, 3
    %p358 = por %p356, %p357
    %p360 = scmp.ne.s32.totalorder %s343, %s359
    %p361 = scmp.eq.s32.totalorder %s26, 0
    %p362 = por %p360, %p361
    %p363 = scmp.le.s32.totalorder 1, %s20
    %p364 = scmp.lt.s32.totalorder %s20, 5
    %p365 = pnand %p363, %p364
    %p366 = pneg %p365
    // Predicated region
    $region9: #{nlce_forward.3} parent=5 // pred_check
      _
    $region10: #{nlce_forward.3} parent=5 // pred_check_branch
      %368 = sbr.rel (%p365) target = $region12
    $region11: #{nlce_forward.3} parent=5 // pred_region
      %s369 = ssub.s32 %s20, 1
      // Predicated region
      $region13: #{nlce_forward.3} parent=11 // pred_check
        %p370 = pneg %p107
      $region14: #{nlce_forward.3} parent=11 // pred_check_branch
        %372 = sbr.rel (%p370) target = $region16
      $region15: #{nlce_forward.3} parent=11 // pred_region
        _
      $region16: #{nlce_forward.3} parent=11 // pred_fallthru
        _
      // Predicated region
      $region17: #{nlce_forward.3} parent=11 // pred_check
        %p373 = pneg %p128
      $region18: #{nlce_forward.3} parent=11 // pred_check_branch
        %375 = sbr.rel (%p373) target = $region20
      $region19: #{nlce_forward.3} parent=11 // pred_region
        _
      $region20: #{nlce_forward.3} parent=11 // pred_fallthru
        _
      // Predicated region
      $region21: #{nlce_forward.3} parent=11 // pred_check
        %p376 = pneg %p149
      $region22: #{nlce_forward.3} parent=11 // pred_check_branch
        %378 = sbr.rel (%p376) target = $region24
      $region23: #{nlce_forward.3} parent=11 // pred_region
        _
      $region24: #{nlce_forward.3} parent=11 // pred_fallthru
        _
      // Predicated region
      $region25: #{nlce_forward.3} parent=11 // pred_check
        %p379 = pneg %p170
      $region26: #{nlce_forward.3} parent=11 // pred_check_branch
        %381 = sbr.rel (%p379) target = $region28
      $region27: #{nlce_forward.3} parent=11 // pred_region
        _
      $region28: #{nlce_forward.3} parent=11 // pred_fallthru
        _
      // Predicated region
      $region29: #{nlce_forward.3} parent=11 // pred_check
        %p382 = pneg %p191
      $region30: #{nlce_forward.3} parent=11 // pred_check_branch
        %384 = sbr.rel (%p382) target = $region32
      $region31: #{nlce_forward.3} parent=11 // pred_region
        _
      $region32: #{nlce_forward.3} parent=11 // pred_fallthru
        _
      // Predicated region
      $region33: #{nlce_forward.3} parent=11 // pred_check
        %p385 = pneg %p212
      $region34: #{nlce_forward.3} parent=11 // pred_check_branch
        %387 = sbr.rel (%p385) target = $region36
      $region35: #{nlce_forward.3} parent=11 // pred_region
        _
      $region36: #{nlce_forward.3} parent=11 // pred_fallthru
        _
      // Predicated region
      $region37: #{nlce_forward.3} parent=11 // pred_check
        %p388 = pneg %p233
      $region38: #{nlce_forward.3} parent=11 // pred_check_branch
        %390 = sbr.rel (%p388) target = $region40
      $region39: #{nlce_forward.3} parent=11 // pred_region
        _
      $region40: #{nlce_forward.3} parent=11 // pred_fallthru
        _
      // Predicated region
      $region41: #{nlce_forward.3} parent=11 // pred_check
        %p391 = pneg %p254
      $region42: #{nlce_forward.3} parent=11 // pred_check_branch
        %393 = sbr.rel (%p391) target = $region44
      $region43: #{nlce_forward.3} parent=11 // pred_region
        _
      $region44: #{nlce_forward.3} parent=11 // pred_fallthru
        _
      // Predicated region
      $region45: #{nlce_forward.3} parent=11 // pred_check
        %p394 = pneg %p275
      $region46: #{nlce_forward.3} parent=11 // pred_check_branch
        %396 = sbr.rel (%p394) target = $region48
      $region47: #{nlce_forward.3} parent=11 // pred_region
        _
      $region48: #{nlce_forward.3} parent=11 // pred_fallthru
        _
    $region12: #{nlce_forward.3} parent=5 // pred_fallthru
      _
    %p397 = scmp.lt.s32.totalorder %s20, 4
    // Predicated region
    $region49: #{nlce_forward.3} parent=5 // pred_check
      %p398 = pneg %p397
    $region50: #{nlce_forward.3} parent=5 // pred_check_branch
      %400 = sbr.rel (%p398) target = $region52
    $region51: #{nlce_forward.3} parent=5 // pred_region
      // Predicated region
      $region53: #{nlce_forward.3} parent=51 // pred_check
        %p401 = pneg %p54
      $region54: #{nlce_forward.3} parent=51 // pred_check_branch
        %403 = sbr.rel (%p401) target = $region56
      $region55: #{nlce_forward.3} parent=51 // pred_region
        %s404 = smul.u32 4, %s28
        %p405 = scmp.lt.s32.totalorder %s27, 1
        %s406 = scalar_select %p405, %s27, 1
        %p407 = scmp.lt.s32.totalorder %s404, 7
        %s408 = scalar_select %p407, %s404, 7
        %s409 = smul.addr %s406, 8
        %s410 = sadd.s32 %s408, %s409
        %s411 = smul.addr %s410, 4
        %s412 = scalar_lea.vmem %s0, %s411
        %s413 = smul.u32 4, %s28
      $region56: #{nlce_forward.3} parent=51 // pred_fallthru
        _
      // Predicated region
      $region57: #{nlce_forward.3} parent=51 // pred_check
        %p414 = pneg %p80
      $region58: #{nlce_forward.3} parent=51 // pred_check_branch
        %416 = sbr.rel (%p414) target = $region60
      $region59: #{nlce_forward.3} parent=51 // pred_region
        %p417 = scmp.lt.s32.totalorder %s27, 1
        %s418 = scalar_select %p417, %s27, 1
        %s419 = smul.addr %s418, 4
        %s420 = scalar_lea.vmem %s1, %s419
      $region60: #{nlce_forward.3} parent=51 // pred_fallthru
        _
    $region52: #{nlce_forward.3} parent=5 // pred_fallthru
      _
    %p421 = scmp.le.s32.totalorder 1, %s20
    %p422 = scmp.lt.s32.totalorder %s20, 5
    %p423 = pnand %p421, %p422
    %p424 = pneg %p423
    // Predicated region
    $region61: #{nlce_forward.3} parent=5 // pred_check
      _
    $region62: #{nlce_forward.3} parent=5 // pred_check_branch
      %426 = sbr.rel (%p423) target = $region64
    $region63: #{nlce_forward.3} parent=5 // pred_region
      %s427 = ssub.s32 %s20, 1
      %s428 = smul.u32 4, %s30
      %p429 = scmp.lt.s32.totalorder %s29, 1
      %s430 = scalar_select %p429, %s29, 1
      %p431 = scmp.lt.s32.totalorder %s428, 7
      %s432 = scalar_select %p431, %s428, 7
      %s433 = smul.addr %s430, 8
      %s434 = sadd.s32 %s432, %s433
      %s435 = smul.addr %s434, 4
      %s436 = scalar_lea.vmem %s0, %s435
      %p437 = pneg %p60
      %p438 = pneg %p57
      %p439 = scmp.lt.s32.totalorder %s29, 1
      %s440 = scalar_select %p439, %s29, 1
      %s441 = smul.addr %s440, 4
      %s442 = scalar_lea.vmem %s1, %s441
      %p443 = pneg %p86
      %p444 = pneg %p83
      %p445 = pneg %p107
      %p446 = pneg %p104
      %p447 = pneg %p128
      %p448 = pneg %p125
      %p449 = pneg %p149
      %p450 = pneg %p146
      %p451 = pneg %p170
      %p452 = pneg %p167
      %p453 = pneg %p191
      %p454 = pneg %p188
      %p455 = pneg %p212
      %p456 = pneg %p209
      %p457 = pneg %p233
      %p458 = pneg %p230
      %p459 = pneg %p254
      %p460 = pneg %p251
      %p461 = pneg %p275
      %p462 = pneg %p272
      %p463 = pneg %p303
      %p464 = pneg %p300
      %s465 = smul.u32 4, %s30
      %p466 = scmp.lt.s32.totalorder %s29, 1
      %s467 = scalar_select %p466, %s29, 1
      %p468 = scmp.lt.s32.totalorder %s465, 7
      %s469 = scalar_select %p468, %s465, 7
      %s470 = smul.addr %s467, 8
      %s471 = sadd.s32 %s469, %s470
      %s472 = smul.addr %s471, 4
      %s473 = scalar_lea.vmem %s11, %s472
      %p474 = pneg %p329
      %p475 = pneg %p326
      %p476 = scmp.lt.s32.totalorder %s29, 1
      %s477 = scalar_select %p476, %s29, 1
      %s478 = smul.addr %s477, 2
      %s479 = scalar_lea.vmem %s12, %s478
      %p480 = pneg %p355
      %p481 = pneg %p352
      %p482 = scmp.lt.s32.totalorder %s29, 1
      %s483 = scalar_select %p482, %s29, 1
      %s484 = scalar_lea.vmem %s13, %s483
      %s485 = smul.u32 4, %s30
      %p486 = scmp.lt.s32.totalorder %s29, 1
      %s487 = scalar_select %p486, %s29, 1
      %p488 = scmp.lt.s32.totalorder %s485, 7
      %s489 = scalar_select %p488, %s485, 7
      %s490 = smul.addr %s487, 8
      %s491 = sadd.s32 %s489, %s490
      %s492 = smul.addr %s491, 4
      %s493 = scalar_lea.vmem %s0, %s492
      %s494 = smul.u32 4, %s30
      %p495 = scmp.lt.s32.totalorder %s29, 1
      %s496 = scalar_select %p495, %s29, 1
      %s497 = smul.addr %s496, 4
      %s498 = scalar_lea.vmem %s1, %s497
      %s499 = smul.u32 4, %s30
      %p500 = scmp.lt.s32.totalorder %s29, 1
      %s501 = scalar_select %p500, %s29, 1
      %p502 = scmp.lt.s32.totalorder %s499, 7
      %s503 = scalar_select %p502, %s499, 7
      %s504 = smul.addr %s501, 8
      %s505 = sadd.s32 %s503, %s504
      %s506 = smul.addr %s505, 4
      %s507 = scalar_lea.vmem %s11, %s506
      %s508 = smul.u32 4, %s30
      %p509 = scmp.lt.s32.totalorder %s29, 1
      %s510 = scalar_select %p509, %s29, 1
      %s511 = smul.addr %s510, 2
      %s512 = scalar_lea.vmem %s12, %s511
      %p513 = scmp.lt.s32.totalorder %s29, 1
      %s514 = scalar_select %p513, %s29, 1
      %s515 = scalar_lea.vmem %s13, %s514
      %p517 = scmp.eq.s32.totalorder %s30, 0
      // Predicated region
      $region65: #{nlce_forward.3} parent=63 // pred_check
        %p518 = pneg %p517
      $region66: #{nlce_forward.3} parent=63 // pred_check_branch
        %520 = sbr.rel (%p518) target = $region68
      $region67: #{nlce_forward.3} parent=63 // pred_region
        %vm521 = vcmask 58368
        %522 = vst.msk [vmem:[#allocation2] sm:$0x3] %vm521, 0.0
        %vm523 = vcmask 8192
        %524 = vst.msk [vmem:[#allocation3] sm:$0x1] %vm523, 0.0
      $region68: #{nlce_forward.3} parent=63 // pred_fallthru
        _
      %v525 = vld [vmem:[%s493] sm:$0xf]
      %v526 = vld [vmem:[%s493 + $0x4] sm:$0xf]
      %v527 = vld [vmem:[%s493 + $0x8] sm:$0xf]
      %v528 = vld [vmem:[%s493 + $0xc] sm:$0xf]
      %v529 = vld [vmem:[%s2] sm:$0xf]
      %v530 = vld [vmem:[%s2 + $0x4] sm:$0xf]
      %v531 = vld [vmem:[%s3] sm:$0x1]
      %v533 = vperm.slane %v531, 0
      %v539 = vunpack.c.l.b16 %v525
      %v540 = vunpack.c.l.b16 %v526
      %v541 = vunpack.c.l.b16 %v527
      %v542 = vunpack.c.l.b16 %v528
      %v543 = vpack.c.b16 %v540, %v539
      %v544 = vpack.c.b16 %v542, %v541
      %v547 = vunpack.c.l.b16 %v529
      %v548 = vunpack.c.l.b16 %v530
      %v549 = vpack.c.b16 %v548, %v547
      %vm551 = vcmask 130048
      %v553 = vsel %vm551, %v543, 0
      %v556 = vsel %vm551, %v544, 0
      %558 = vmatpush.bf16.msra.mxu0 0
      %559 = vmatpush.bf16.msra.mxu0 0
      %560 = vmatpush.bf16.msra.mxu0 0
      %561 = vmatpush.bf16.msra.mxu0 0
      %562 = vmatpush.bf16.msra.mxu0 0
      %563 = vmatpush.bf16.msra.mxu0 0
      %564 = vmatpush.bf16.msra.mxu0 0
      %565 = vmatpush.bf16.msra.mxu0 %v549
      %566 = vmatmul.bf16.gmra.mxu0 %v553
      %v567 = vpop.f32.mrf.mxu0
      %v568 = vadd.f32 %v533, %v567
      %v569 = vpop.f32.mrf.mxu0
      %v570 = vadd.f32 %v533, %v569
      %571 = vmatmul.bf16.gmra.mxu0 %v556
      %v572 = vpop.f32.mrf.mxu0
      %v573 = vadd.f32 %v533, %v572
      %v574 = vpop.f32.mrf.mxu0
      %v575 = vadd.f32 %v533, %v574
      %576 = vdwg.mxu0
      %v577 = vpack.c.bf16 %v570, %v568
      %v578 = vpack.c.bf16 %v575, %v573
      %v579 = vld [vmem:[%s498] sm:$0xf]
      %vm580 = vcmask 64512
      %v582 = vsel %vm580, %v577, 0
      %v585 = vsel %vm580, %v578, 0
      %vm587 = vcmask 1043456
      %v589 = vsel %vm587, %v579, 0
      %591 = vmatpush.bf16.msra.mxu0 0
      %592 = vmatpush.bf16.msra.mxu0 0
      %593 = vmatpush.bf16.msra.mxu0 0
      %594 = vmatpush.bf16.msra.mxu0 0
      %595 = vmatpush.bf16.msra.mxu0 0
      %596 = vmatpush.bf16.msra.mxu0 0
      %597 = vmatpush.bf16.msra.mxu0 0
      %598 = vmatpush.bf16.msra.mxu0 %v589
      %599 = vmatmul.bf16.gmra.mxu0 %v582
      %v600 = vpop.f32.mrf.mxu0
      %v601 = vadd.f32 0.0, %v600
      %v602 = vpop.f32.mrf.mxu0
      %v603 = vadd.f32 0.0, %v602
      %604 = vmatmul.bf16.gmra.mxu0 %v585
      %v605 = vpop.f32.mrf.mxu0
      %v606 = vadd.f32 0.0, %v605
      %v607 = vpop.f32.mrf.mxu0
      %v608 = vadd.f32 0.0, %v607
      %609 = vdwg.mxu0
      %v610 = vpack.c.bf16 %v603, %v601
      %v611 = vpack.c.bf16 %v608, %v606
      %v612 = vld [vmem:[%s4] sm:$0xf]
      %v613 = vld [vmem:[%s5] sm:$0x1]
      %v615 = vperm.slane %v613, 0
      %v618 = vsel %vm580, %v610, 0
      %v621 = vsel %vm580, %v611, 0
      %v624 = vsel %vm587, %v612, 0
      %626 = vmatpush.bf16.msra.mxu0 0
      %627 = vmatpush.bf16.msra.mxu0 0
      %628 = vmatpush.bf16.msra.mxu0 0
      %629 = vmatpush.bf16.msra.mxu0 0
      %630 = vmatpush.bf16.msra.mxu0 0
      %631 = vmatpush.bf16.msra.mxu0 0
      %632 = vmatpush.bf16.msra.mxu0 0
      %633 = vmatpush.bf16.msra.mxu0 %v624
      %634 = vmatmul.bf16.gmra.mxu0 %v618
      %v635 = vpop.f32.mrf.mxu0
      %v636 = vadd.f32 %v615, %v635
      %v637 = vpop.f32.mrf.mxu0
      %v638 = vadd.f32 %v615, %v637
      %639 = vmatmul.bf16.gmra.mxu0 %v621
      %v640 = vpop.f32.mrf.mxu0
      %v641 = vadd.f32 %v615, %v640
      %v642 = vpop.f32.mrf.mxu0
      %v643 = vadd.f32 %v615, %v642
      %644 = vdwg.mxu0
      %v645 = vunpack.c.l.bf16 %v525
      %v646 = vunpack.c.l.bf16 %v526
      %v647 = vunpack.c.l.bf16 %v527
      %v648 = vunpack.c.l.bf16 %v528
      %v649 = vadd.f32 %v636, %v645
      %v650 = vadd.f32 %v638, %v646
      %v651 = vadd.f32 %v641, %v647
      %v652 = vadd.f32 %v643, %v648
      %v653 = vpack.c.bf16 %v649, %v649
      %v654 = vpack.c.bf16 %v650, %v650
      %v655 = vpack.c.bf16 %v651, %v651
      %v656 = vpack.c.bf16 %v652, %v652
      %vm657 = vcmask 125952
      %658 = vst.msk [vmem:[%s507] sm:$0xf] %vm657, %v653
      %659 = vst.msk [vmem:[%s507 + $0x4] sm:$0xf] %vm657, %v654
      %660 = vst.msk [vmem:[%s507 + $0x8] sm:$0xf] %vm657, %v655
      %661 = vst.msk [vmem:[%s507 + $0xc] sm:$0xf] %vm657, %v656
      %v662 = vld [vmem:[%s6] sm:$0xf]
      %v663 = vld [vmem:[%s6 + $0x4] sm:$0xf]
      %v664 = vld [vmem:[%s7] sm:$0x1]
      %v666 = vperm.slane %v664, 0
      %v672 = vunpack.c.l.b16 %v653
      %v673 = vunpack.c.l.b16 %v654
      %v674 = vunpack.c.l.b16 %v655
      %v675 = vunpack.c.l.b16 %v656
      %v676 = vpack.c.b16 %v673, %v672
      %v677 = vpack.c.b16 %v675, %v674
      %v680 = vunpack.c.l.b16 %v662
      %v681 = vunpack.c.l.b16 %v663
      %v682 = vpack.c.b16 %v681, %v680
      %v685 = vsel %vm551, %v676, 0
      %v688 = vsel %vm551, %v677, 0
      %690 = vmatpush.bf16.msra.mxu0 0
      %691 = vmatpush.bf16.msra.mxu0 0
      %692 = vmatpush.bf16.msra.mxu0 0
      %693 = vmatpush.bf16.msra.mxu0 0
      %694 = vmatpush.bf16.msra.mxu0 0
      %695 = vmatpush.bf16.msra.mxu0 0
      %696 = vmatpush.bf16.msra.mxu0 0
      %697 = vmatpush.bf16.msra.mxu0 %v682
      %698 = vmatmul.bf16.gmra.mxu0 %v685
      %v699 = vpop.f32.mrf.mxu0
      %v700 = vadd.f32 %v666, %v699
      %v701 = vpop.f32.mrf.mxu0
      %v702 = vadd.f32 %v666, %v701
      %703 = vmatmul.bf16.gmra.mxu0 %v688
      %v704 = vpop.f32.mrf.mxu0
      %v705 = vadd.f32 %v666, %v704
      %v706 = vpop.f32.mrf.mxu0
      %v707 = vadd.f32 %v666, %v706
      %708 = vdwg.mxu0
      %v709 = vpack.c.bf16 %v702, %v700
      %v710 = vpack.c.bf16 %v707, %v705
      %v711 = vmul.f32 %v700, %v700
      %v712 = vmul.f32 %v702, %v702
      %v713 = vmul.f32 %v705, %v705
      %v714 = vmul.f32 %v707, %v707
      %v715 = vsel %vm580, %v711, 0.0
      %716 = vadd.xlane.f32.xlu0 %v715
      %v717 = vpop.xlane.xlu0 %716
      %v718 = vsel %vm580, %v712, 0.0
      %719 = vadd.xlane.f32.xlu0 %v718
      %v720 = vpop.xlane.xlu0 %719
      %v721 = vsel %vm580, %v713, 0.0
      %722 = vadd.xlane.f32.xlu0 %v721
      %v723 = vpop.xlane.xlu0 %722
      %v724 = vsel %vm580, %v714, 0.0
      %725 = vadd.xlane.f32.xlu0 %v724
      %v726 = vpop.xlane.xlu0 %725
      %v727 = vld [vmem:[%s8] sm:$0xf]
      %v729 = vsel %vm580, %v709, 0
      %v732 = vsel %vm580, %v710, 0
      %v735 = vsel %vm587, %v727, 0
      %737 = vmatpush.bf16.msra.mxu0 0
      %738 = vmatpush.bf16.msra.mxu0 0
      %739 = vmatpush.bf16.msra.mxu0 0
      %740 = vmatpush.bf16.msra.mxu0 0
      %741 = vmatpush.bf16.msra.mxu0 0
      %742 = vmatpush.bf16.msra.mxu0 0
      %743 = vmatpush.bf16.msra.mxu0 0
      %744 = vmatpush.bf16.msra.mxu0 %v735
      %745 = vmatmul.bf16.gmra.mxu0 %v729
      %v746 = vpop.f32.mrf.mxu0
      %v747 = vadd.f32 0.0, %v746
      %v748 = vpop.f32.mrf.mxu0
      %v749 = vadd.f32 0.0, %v748
      %750 = vmatmul.bf16.gmra.mxu0 %v732
      %v751 = vpop.f32.mrf.mxu0
      %v752 = vadd.f32 0.0, %v751
      %v753 = vpop.f32.mrf.mxu0
      %v754 = vadd.f32 0.0, %v753
      %755 = vdwg.mxu0
      %v756 = vld [vmem:[%s10] sm:$0x1]
      %v757 = vmul.f32 %v747, 2.0
      %v758 = vmul.f32 %v749, 2.0
      %v759 = vmul.f32 %v752, 2.0
      %v760 = vmul.f32 %v754, 2.0
      %v761 = vsub.f32 %v717, %v757
      %v762 = vsub.f32 %v720, %v758
      %v763 = vsub.f32 %v723, %v759
      %v764 = vsub.f32 %v726, %v760
      %v765 = vld [vmem:[%s9] sm:$0x1]
      %v767 = vperm.slane %v765, 0
      %v769 = vadd.f32 %v761, %v767
      %v770 = vadd.f32 %v762, %v767
      %v771 = vadd.f32 %v763, %v767
      %v772 = vadd.f32 %v764, %v767
      %v774 = vperm.slane %v756, 0
      %v776 = vmul.f32 %v774, %v769
      %v777 = vmul.f32 %v774, %v770
      %v778 = vmul.f32 %v774, %v771
      %v779 = vmul.f32 %v774, %v772
      %vm780 = vcmask 15360
      %v781 = vsel %vm780, %v776, -inf
      %782 = vmax.xlane.f32.xlu0 %v781
      %v783 = vpop.xlane.xlu0 %782
      %v784 = vsel %vm780, %v777, -inf
      %785 = vmax.xlane.f32.xlu0 %v784
      %v786 = vpop.xlane.xlu0 %785
      %v787 = vsel %vm780, %v778, -inf
      %788 = vmax.xlane.f32.xlu0 %v787
      %v789 = vpop.xlane.xlu0 %788
      %v790 = vsel %vm780, %v779, -inf
      %791 = vmax.xlane.f32.xlu0 %v790
      %v792 = vpop.xlane.xlu0 %791
      %v793 = vsub.f32 %v776, %v783
      %v794 = vsub.f32 %v777, %v786
      %v795 = vsub.f32 %v778, %v789
      %v796 = vsub.f32 %v779, %v792
      %v797 = vmul.f32 %v793, 1.442695
      %v798 = vpow.pop %v797
      %v799 = vmul.f32 %v794, 1.442695
      %v800 = vpow.pop %v799
      %v801 = vmul.f32 %v795, 1.442695
      %v802 = vpow.pop %v801
      %v803 = vmul.f32 %v796, 1.442695
      %v804 = vpow.pop %v803
      %v805 = vsel %vm780, %v798, 0.0
      %806 = vadd.xlane.f32.xlu0 %v805
      %v807 = vpop.xlane.xlu0 %806
      %v808 = vsel %vm780, %v800, 0.0
      %809 = vadd.xlane.f32.xlu0 %v808
      %v810 = vpop.xlane.xlu0 %809
      %v811 = vsel %vm780, %v802, 0.0
      %812 = vadd.xlane.f32.xlu0 %v811
      %v813 = vpop.xlane.xlu0 %812
      %v814 = vsel %vm780, %v804, 0.0
      %815 = vadd.xlane.f32.xlu0 %v814
      %v816 = vpop.xlane.xlu0 %815
      %v817 = vrcp.pop %v807
      %v818 = vrcp.pop %v810
      %v819 = vrcp.pop %v813
      %v820 = vrcp.pop %v816
      %v821 = vmul.f32 %v798, %v817
      %v822 = vmul.f32 %v800, %v818
      %v823 = vmul.f32 %v802, %v819
      %v824 = vmul.f32 %v804, %v820
      %v825 = vld [vmem:[#allocation3] sm:$0x1]
      %v826 = vsel %vm780, %v821, 0.0
      %v827 = vsel %vm780, %v822, 0.0
      %v828 = vadd.f32 %v826, %v827
      %v829 = vsel %vm780, %v823, 0.0
      %v830 = vadd.f32 %v828, %v829
      %v831 = vsel %vm780, %v824, 0.0
      %v832 = vadd.f32 %v830, %v831
      %v833 = vrot.slane %v832, 4
      %v834 = vadd.f32 %v832, %v833
      %v835 = vrot.slane %v834, 2
      %v836 = vadd.f32 %v834, %v835
      %v837 = vrot.slane %v836, 1
      %v838 = vadd.f32 %v836, %v837
      %v839 = vadd.f32 %v825, %v838
      %vm840 = vcmask 8192
      %841 = vst.msk [vmem:[#allocation3] sm:$0x1] %vm840, %v839
      %v842 = vld [vmem:[#allocation2] sm:$0x3]
      %v843 = vpack.c.bf16 %v822, %v821
      %v844 = vpack.c.bf16 %v824, %v823
      %845 = vxpose.xlu0.c.b16.start [1/8] %v843, 128
      %846 = vxpose.xlu0.c.b16.cont [2/8] %v844, 128
      %847 = vxpose.xlu0.c.b16.cont [3/8] 0, 128
      %848 = vxpose.xlu0.c.b16.cont [4/8] 0, 128
      %849 = vxpose.xlu0.c.b16.cont [5/8] 0, 128
      %850 = vxpose.xlu0.c.b16.cont [6/8] 0, 128
      %851 = vxpose.xlu0.c.b16.cont [7/8] 0, 128
      %852 = vxpose.xlu0.c.b16.end [8/8] 0, 128
      %v853 = vpop.trf.xlu0
      %v854 = vpop.trf.xlu0
      %v855 = vpop.trf.xlu0
      %v856 = vpop.trf.xlu0
      %v857 = vpop.trf.xlu0
      %v858 = vpop.trf.xlu0
      %v859 = vpop.trf.xlu0
      %v860 = vpop.trf.xlu0
      %vm861 = vcmask 261120
      %v863 = vsel %vm861, %v853, 0
      %865 = vmatpush.bf16.msra.mxu0 0
      %866 = vmatpush.bf16.msra.mxu0 0
      %867 = vmatpush.bf16.msra.mxu0 0
      %868 = vmatpush.bf16.msra.mxu0 0
      %869 = vmatpush.bf16.msra.mxu0 0
      %870 = vmatpush.bf16.msra.mxu0 0
      %871 = vmatpush.bf16.msra.mxu0 %v710
      %872 = vmatpush.bf16.msra.mxu0 %v709
      %873 = vmatmul.bf16.gmra.mxu0 %v863
      %v874 = vpop.f32.mrf.mxu0
      %v875 = vadd.f32 0.0, %v874
      %v876 = vpop.f32.mrf.mxu0
      %877 = vdwg.mxu0
      %v878 = vadd.f32 %v842, %v875
      %vm879 = vcmask 58368
      %880 = vst.msk [vmem:[#allocation2] sm:$0x3] %vm879, %v878
      %p881 = scmp.eq.s32.totalorder %s30, 1
      // Predicated region
      $region69: #{nlce_forward.3} parent=63 // pred_check
        %p882 = pneg %p881
      $region70: #{nlce_forward.3} parent=63 // pred_check_branch
        %884 = sbr.rel (%p882) target = $region72
      $region71: #{nlce_forward.3} parent=63 // pred_region
        %v885 = vld [vmem:[#allocation2] sm:$0x3]
        %886 = vst.msk [vmem:[%s512] sm:$0x3] %vm879, %v885
        %v887 = vld [vmem:[#allocation3] sm:$0x1]
        %888 = vst.msk [vmem:[%s515] sm:$0x1] %vm840, %v887
      $region72: #{nlce_forward.3} parent=63 // pred_fallthru
        _
      %s889 = smul.u32 4, %s30
      %p890 = scmp.lt.s32.totalorder %s29, 1
      %s891 = scalar_select %p890, %s29, 1
      %p892 = scmp.lt.s32.totalorder %s889, 7
      %s893 = scalar_select %p892, %s889, 7
      %s894 = smul.addr %s891, 8
      %s895 = sadd.s32 %s893, %s894
      %s896 = smul.addr %s895, 4
      %s897 = scalar_lea.vmem %s11, %s896
      %p898 = scmp.lt.s32.totalorder %s29, 1
      %s899 = scalar_select %p898, %s29, 1
      %s900 = smul.addr %s899, 2
      %s901 = scalar_lea.vmem %s12, %s900
      %p902 = scmp.lt.s32.totalorder %s29, 1
      %s903 = scalar_select %p902, %s29, 1
      %s904 = scalar_lea.vmem %s13, %s903
      // Predicated region
      $region73: #{nlce_forward.3} parent=63 // pred_check
        %p905 = pneg %p300
      $region74: #{nlce_forward.3} parent=63 // pred_check_branch
        %907 = sbr.rel (%p905) target = $region76
      $region75: #{nlce_forward.3} parent=63 // pred_region
        %s908 = smul.u32 4, %s30
      $region76: #{nlce_forward.3} parent=63 // pred_fallthru
        _
      // Predicated region
      $region77: #{nlce_forward.3} parent=63 // pred_check
        %p909 = pneg %p326
      $region78: #{nlce_forward.3} parent=63 // pred_check_branch
        %911 = sbr.rel (%p909) target = $region80
      $region79: #{nlce_forward.3} parent=63 // pred_region
        _
      $region80: #{nlce_forward.3} parent=63 // pred_fallthru
        _
      // Predicated region
      $region81: #{nlce_forward.3} parent=63 // pred_check
        %p912 = pneg %p352
      $region82: #{nlce_forward.3} parent=63 // pred_check_branch
        %914 = sbr.rel (%p912) target = $region84
      $region83: #{nlce_forward.3} parent=63 // pred_region
        _
      $region84: #{nlce_forward.3} parent=63 // pred_fallthru
        _
    $region64: #{nlce_forward.3} parent=5 // pred_fallthru
      _
    %p915 = scmp.le.s32.totalorder 2, %s20
    // Predicated region
    $region85: #{nlce_forward.3} parent=5 // pred_check
      %p916 = pneg %p915
    $region86: #{nlce_forward.3} parent=5 // pred_check_branch
      %918 = sbr.rel (%p916) target = $region88
    $region87: #{nlce_forward.3} parent=5 // pred_region
      %s919 = ssub.s32 %s20, 2
      // Predicated region
      $region89: #{nlce_forward.3} parent=87 // pred_check
        %p920 = pneg %p306
      $region90: #{nlce_forward.3} parent=87 // pred_check_branch
        %922 = sbr.rel (%p920) target = $region92
      $region91: #{nlce_forward.3} parent=87 // pred_region
        %s923 = smul.u32 4, %s32
        %p924 = scmp.lt.s32.totalorder %s31, 1
        %s925 = scalar_select %p924, %s31, 1
        %p926 = scmp.lt.s32.totalorder %s923, 7
        %s927 = scalar_select %p926, %s923, 7
        %s928 = smul.addr %s925, 8
        %s929 = sadd.s32 %s927, %s928
        %s930 = smul.addr %s929, 4
        %s931 = scalar_lea.vmem %s11, %s930
      $region92: #{nlce_forward.3} parent=87 // pred_fallthru
        _
      // Predicated region
      $region93: #{nlce_forward.3} parent=87 // pred_check
        %p932 = pneg %p332
      $region94: #{nlce_forward.3} parent=87 // pred_check_branch
        %934 = sbr.rel (%p932) target = $region96
      $region95: #{nlce_forward.3} parent=87 // pred_region
        %p935 = scmp.lt.s32.totalorder %s31, 1
        %s936 = scalar_select %p935, %s31, 1
        %s937 = smul.addr %s936, 2
        %s938 = scalar_lea.vmem %s12, %s937
      $region96: #{nlce_forward.3} parent=87 // pred_fallthru
        _
      // Predicated region
      $region97: #{nlce_forward.3} parent=87 // pred_check
        %p939 = pneg %p358
      $region98: #{nlce_forward.3} parent=87 // pred_check_branch
        %941 = sbr.rel (%p939) target = $region100
      $region99: #{nlce_forward.3} parent=87 // pred_region
        %p942 = scmp.lt.s32.totalorder %s31, 1
        %s943 = scalar_select %p942, %s31, 1
        %s944 = scalar_lea.vmem %s13, %s943
      $region100: #{nlce_forward.3} parent=87 // pred_fallthru
        _
    $region88: #{nlce_forward.3} parent=5 // pred_fallthru
      _
  $region6: #{nlce_forward.3} parent=0 // loop_footer
    %s24 = sadd.s32 1, %s20
  $region7: #{nlce_forward.3} parent=0 // loop_footer_branch
    %19 = sbr.rel target = $region3
  $region8: #{nlce_forward.3} parent=0 // loop_exit
    _

</llo_original>
